<compile_context>
chip_gen: v7x
topology: tpu7x:2x2x1
jax: 0.10.0
libtpu: 0.0.40
codegen_flags: <defaults>
</compile_context>

<pallas_src>
import jax
import jax.numpy as jnp
import numpy as np
from jax.experimental import pallas as pl
from jax.experimental.pallas import tpu as pltpu


def _round_up(x, m):
    return ((x + m - 1) // m) * m


_NUM_TC = None


def _num_tc():
    """TensorCores per chip: 2 on v7x, 1 on v5e/v6e (lazy, best-effort)."""
    global _NUM_TC
    if _NUM_TC is None:
        try:
            kind = jax.devices()[0].device_kind.lower()
            _NUM_TC = 2 if ("v7" in kind or "7x" in kind) else 1
        except Exception:
            _NUM_TC = 1
    return _NUM_TC


def _widths(L, K1, K2):
    A1 = L - K1 + 1                       # conv1 output length
    A4 = L - K1 - 2 * K2                  # valid width of the uncompacted chain
    n_feat = ((A1 // 2) - K2 + 1) // 2    # features the torch module produces
    return A4, n_feat


def _branch(x, w1_ref, b1_ref, w2_ref, b2_ref):
    """conv(K1)+relu+pool(2), conv(K2)+relu+pool(2) on a (B, Lpad) value.

    All intermediates stay at the full lane-aligned padded width; taps and
    pools are lane rotations (pltpu.roll -> XLU slot).  Pooling is left
    uncompacted: column 4*p of the result holds pooled feature p; every other
    column is garbage that the zero rows of the expanded fc1 weights kill.
    """
    K1 = w1_ref.shape[0]
    K2 = w2_ref.shape[0]
    L = x.shape[1]

    # conv1 (valid): c[i] = b1 + sum_j w1[j] * x[i + j]
    c = b1_ref[0] + w1_ref[0] * x
    for j in range(1, K1):
        c = c + w1_ref[j] * pltpu.roll(x, shift=L - j, axis=1)
    c = jnp.maximum(c, 0.0)                                   # ReLU

    # pool1 (uncompacted): m[i] = max(c[i], c[i+1])
    m = jnp.maximum(c, pltpu.roll(c, shift=L - 1, axis=1))

    # conv2 on the pooled sequence == stride-2 taps: c2[i] = b2 + sum_j w2[j]*m[i+2j]
    c2 = b2_ref[0] + w2_ref[0] * m
    for j in range(1, K2):
        c2 = c2 + w2_ref[j] * pltpu.roll(m, shift=L - 2 * j, axis=1)
    c2 = jnp.maximum(c2, 0.0)                                 # ReLU

    # pool2 (uncompacted): m2[i] = max(c2[i], c2[i+2])
    return jnp.maximum(c2, pltpu.roll(c2, shift=L - 2, axis=1))   # (B, Lpad)


def _binding_cf_kernel(x_pro_ref, x_lig_ref,
                       pw1_ref, pb1_ref, pw2_ref, pb2_ref,
                       lw1_ref, lb1_ref, lw2_ref, lb2_ref,
                       w1p_ref, w1l_ref, b1_ref,
                       w2_ref, b2_ref, w3_ref, b3_ref,
                       out_ref):
    mp = _branch(x_pro_ref[...], pw1_ref, pb1_ref, pw2_ref, pb2_ref)  # (B, Lp_pad)
    ml = _branch(x_lig_ref[...], lw1_ref, lb1_ref, lw2_ref, lb2_ref)  # (B, Ll_pad)

    # fc1: stride-4 compaction + concat + garbage-lane masking are all folded
    # into the row-expanded (zero-padded) weight matrices built in the wrapper.
    h = (jnp.dot(mp, w1p_ref[...], preferred_element_type=jnp.float32)
         + jnp.dot(ml, w1l_ref[...], preferred_element_type=jnp.float32)
         + b1_ref[...])
    h = jnp.maximum(h, 0.0)                                           # relu(fc1)
    h = jnp.dot(h, w2_ref[...], preferred_element_type=jnp.float32) + b2_ref[...]
    h = jnp.maximum(h, 0.0)                                           # relu(fc2)
    h = jnp.dot(h, w3_ref[...], preferred_element_type=jnp.float32) + b3_ref[...]
    out_ref[...] = 1.0 / (1.0 + jnp.exp(-h))                          # sigmoid (EUP exp)


def prepare_params(params, Lp, Ll):
    """One-time host-side (numpy) parameter prep.

    Row 4*p of W1*_exp carries W1[:, p] (zeros elsewhere) at the lane-aligned
    padded width, so M2 @ W1*_exp performs the stride-4 pooling compaction and
    masks the uncompacted/padded garbage lanes for free.  fc2/fc3 are
    pre-transposed, biases are made lane-dense (1, N).
    """
    Lp_pad = _round_up(Lp, 128)
    Ll_pad = _round_up(Ll, 128)
    A4p, n_pro = _widths(Lp, 3, 6)
    A4l, n_lig = _widths(Ll, 3, 4)
    assert n_pro + n_lig == 190, "input lengths must flatten to 190 features"
    assert 4 * (n_pro - 1) < A4p and 4 * (n_lig - 1) < A4l

    W1 = np.asarray(params["fc1_w"], np.float32)                  # (90, 190)
    w1p = np.zeros((Lp_pad, 90), np.float32)
    w1p[np.arange(n_pro) * 4] = W1[:, :n_pro].T
    w1l = np.zeros((Ll_pad, 90), np.float32)
    w1l[np.arange(n_lig) * 4] = W1[:, n_pro:].T

    def f32(a):
        return jnp.asarray(np.asarray(a, np.float32))

    return {
        "pconv1_w": f32(params["pconv1_w"]), "pconv1_b": f32(params["pconv1_b"]),
        "pconv2_w": f32(params["pconv2_w"]), "pconv2_b": f32(params["pconv2_b"]),
        "lconv1_w": f32(params["lconv1_w"]), "lconv1_b": f32(params["lconv1_b"]),
        "lconv2_w": f32(params["lconv2_w"]), "lconv2_b": f32(params["lconv2_b"]),
        "w1p": jnp.asarray(w1p), "w1l": jnp.asarray(w1l),
        "fc1_b": f32(np.asarray(params["fc1_b"], np.float32)[None, :]),
        "fc2_wT": f32(np.asarray(params["fc2_w"], np.float32).T),
        "fc2_b": f32(np.asarray(params["fc2_b"], np.float32)[None, :]),
        "fc3_wT": f32(np.asarray(params["fc3_w"], np.float32).T),
        "fc3_b": f32(np.asarray(params["fc3_b"], np.float32)[None, :]),
    }


@jax.jit
def binding_cf_forward(x_lig, x_pro, prepped):
    """x_lig: (B, 1, L_lig), x_pro: (B, 1, L_pro) -> (B, 1, 1), like the torch module."""
    B = x_pro.shape[0]
    Lp = x_pro.shape[-1]
    Ll = x_lig.shape[-1]
    Lp_pad = _round_up(Lp, 128)
    Ll_pad = _round_up(Ll, 128)
    assert prepped["w1p"].shape[0] == Lp_pad and prepped["w1l"].shape[0] == Ll_pad

    # Batch block: split into >= 2 parallel grid steps on v7x (2 TCs) when the
    # batch is big enough; keep one large block on single-TC chips (v5e/v6e).
    n_tc = _num_tc()
    if n_tc > 1 and B >= 16:
        bb = min(128, max(8, _round_up(-(-B // n_tc), 8)))
    else:
        bb = min(B, 128)
    B_pad = _round_up(B, bb)

    xp = x_pro[:, 0, :].astype(jnp.float32)        # (B, Lp)  batch on sublanes
    xl = x_lig[:, 0, :].astype(jnp.float32)        # (B, Ll)
    xp = jnp.pad(xp, ((0, B_pad - B), (0, Lp_pad - Lp)))
    xl = jnp.pad(xl, ((0, B_pad - B), (0, Ll_pad - Ll)))

    args = (
        xp, xl,
        prepped["pconv1_w"], prepped["pconv1_b"],
        prepped["pconv2_w"], prepped["pconv2_b"],
        prepped["lconv1_w"], prepped["lconv1_b"],
        prepped["lconv2_w"], prepped["lconv2_b"],
        prepped["w1p"], prepped["w1l"], prepped["fc1_b"],
        prepped["fc2_wT"], prepped["fc2_b"],
        prepped["fc3_wT"], prepped["fc3_b"],
    )

    smem = pl.BlockSpec(memory_space=pltpu.MemorySpace.SMEM)
    vmem = pl.BlockSpec(memory_space=pltpu.MemorySpace.VMEM)
    in_specs = (
        [pl.BlockSpec((bb, Lp_pad), lambda i: (i, 0)),
         pl.BlockSpec((bb, Ll_pad), lambda i: (i, 0))]
        + [smem] * 8          # tiny conv weights/biases (scalars)
        + [vmem] * 7          # pre-expanded/transposed fc weights + lane-dense biases
    )
    out_specs = pl.BlockSpec((bb, 1), lambda i: (i, 0))
    # TODO(synk): optionally present the per-block output lane-dense (1, bb) to
    # avoid the width-1 masked store; byte count is tiny so it is left as-is.

    out = pl.pallas_call(
        _binding_cf_kernel,
        out_shape=jax.ShapeDtypeStruct((B_pad, 1), jnp.float32),
        grid=(B_pad // bb,),
        in_specs=in_specs,
        out_specs=out_specs,
        compiler_params=pltpu.CompilerParams(dimension_semantics=("parallel",)),
    )(*args)
    return out[:B, :, None]                         # (B, 1, 1)


def init_params(key):
    """Deterministic init mirroring the torch module's parameter shapes."""
    ks = jax.random.split(key, 14)

    def u(k, shape, fan_in):
        bound = 1.0 / np.sqrt(fan_in)
        return jax.random.uniform(k, shape, jnp.float32, -bound, bound)

    return dict(
        pconv1_w=u(ks[0], (3,), 3), pconv1_b=u(ks[1], (1,), 3),
        pconv2_w=u(ks[2], (6,), 6), pconv2_b=u(ks[3], (1,), 6),
        lconv1_w=u(ks[4], (3,), 3), lconv1_b=u(ks[5], (1,), 3),
        lconv2_w=u(ks[6], (4,), 4), lconv2_b=u(ks[7], (1,), 4),
        fc1_w=u(ks[8], (90, 190), 190), fc1_b=u(ks[9], (90,), 190),
        fc2_w=u(ks[10], (10, 90), 90), fc2_b=u(ks[11], (10,), 90),
        fc3_w=u(ks[12], (1, 10), 10), fc3_b=u(ks[13], (1,), 10),
    )


def ref_forward(x_lig, x_pro, p):
    """Pure-JAX reference matching the torch forward semantics."""
    def conv1d(x, w, b):                           # x: (B, L)
        K = w.shape[0]
        Lc = x.shape[1] - K + 1
        return b[0] + sum(w[j] * x[:, j:j + Lc] for j in range(K))

    def relu(x):
        return jnp.maximum(x, 0.0)

    def pool(x):
        P = x.shape[1] // 2
        return jnp.maximum(x[:, 0:2 * P:2], x[:, 1:2 * P:2])

    xp = x_pro[:, 0, :]
    xl = x_lig[:, 0, :]
    xp = pool(relu(conv1d(xp, p["pconv1_w"], p["pconv1_b"])))
    xp = pool(relu(conv1d(xp, p["pconv2_w"], p["pconv2_b"])))
    xl = pool(relu(conv1d(xl, p["lconv1_w"], p["lconv1_b"])))
    xl = pool(relu(conv1d(xl, p["lconv2_w"], p["lconv2_b"])))
    x = jnp.concatenate([xp, xl], axis=-1)         # (B, 190)
    x = relu(x @ p["fc1_w"].T + p["fc1_b"])
    x = relu(x @ p["fc2_w"].T + p["fc2_b"])
    x = x @ p["fc3_w"].T + p["fc3_b"]
    return jax.nn.sigmoid(x)[:, :, None]           # (B, 1, 1)


if __name__ == "__main__":
    key = jax.random.PRNGKey(0)
    kp, kl, kparam = jax.random.split(key, 3)
    B, Lp, Ll = 2, 600, 180                        # -> 147 + 43 = 190 features
    x_pro = jax.random.normal(kp, (B, 1, Lp), jnp.float32)
    x_lig = jax.random.normal(kl, (B, 1, Ll), jnp.float32)
    params = init_params(kparam)

    prepped = prepare_params(params, Lp, Ll)       # one-time host-side prep
    out = binding_cf_forward(x_lig, x_pro, prepped)
    out = jax.block_until_ready(out)
    assert out.shape == (B, 1, 1)

    ref = ref_forward(x_lig, x_pro, params)
    np.testing.assert_allclose(np.asarray(out), np.asarray(ref), atol=2e-3, rtol=2e-3)
    print("KERNEL_OK")
</pallas_src>

<mosaic_0001>
module attributes {stable_mosaic.version = 11 : i64} {
  func.func @_binding_cf_kernel(%arg0: i32, %arg1: memref<2x640xf32, #tpu.memory_space<vmem>>, %arg2: memref<2x256xf32, #tpu.memory_space<vmem>>, %arg3: memref<3xf32, #tpu.memory_space<smem>>, %arg4: memref<1xf32, #tpu.memory_space<smem>>, %arg5: memref<6xf32, #tpu.memory_space<smem>>, %arg6: memref<1xf32, #tpu.memory_space<smem>>, %arg7: memref<3xf32, #tpu.memory_space<smem>>, %arg8: memref<1xf32, #tpu.memory_space<smem>>, %arg9: memref<4xf32, #tpu.memory_space<smem>>, %arg10: memref<1xf32, #tpu.memory_space<smem>>, %arg11: memref<640x90xf32, #tpu.memory_space<vmem>>, %arg12: memref<256x90xf32, #tpu.memory_space<vmem>>, %arg13: memref<1x90xf32, #tpu.memory_space<vmem>>, %arg14: memref<90x10xf32, #tpu.memory_space<vmem>>, %arg15: memref<1x10xf32, #tpu.memory_space<vmem>>, %arg16: memref<10x1xf32, #tpu.memory_space<vmem>>, %arg17: memref<1x1xf32, #tpu.memory_space<vmem>>, %arg18: memref<2x1xf32, #tpu.memory_space<vmem>>) attributes {dimension_semantics = [#tpu.dimension_semantics<parallel>], iteration_bounds = array<i64: 1>, scalar_prefetch = 0 : i64, scratch_operands = 0 : i64, tpu.core_type = #tpu.core_type<tc>, window_params = [{transform_indices = @transform_0, window_bounds = array<i64: 2, 640>}, {transform_indices = @transform_1, window_bounds = array<i64: 2, 256>}, {transform_indices = @transform_2, window_bounds = array<i64: 3>}, {transform_indices = @transform_3, window_bounds = array<i64: 1>}, {transform_indices = @transform_4, window_bounds = array<i64: 6>}, {transform_indices = @transform_5, window_bounds = array<i64: 1>}, {transform_indices = @transform_6, window_bounds = array<i64: 3>}, {transform_indices = @transform_7, window_bounds = array<i64: 1>}, {transform_indices = @transform_8, window_bounds = array<i64: 4>}, {transform_indices = @transform_9, window_bounds = array<i64: 1>}, {pipeline_mode = #tpu.pipeline_mode<synchronous>, transform_indices = @transform_10, window_bounds = array<i64: 640, 90>}, {pipeline_mode = #tpu.pipeline_mode<synchronous>, transform_indices = @transform_11, window_bounds = array<i64: 256, 90>}, {pipeline_mode = #tpu.pipeline_mode<synchronous>, transform_indices = @transform_12, window_bounds = array<i64: 1, 90>}, {pipeline_mode = #tpu.pipeline_mode<synchronous>, transform_indices = @transform_13, window_bounds = array<i64: 90, 10>}, {pipeline_mode = #tpu.pipeline_mode<synchronous>, transform_indices = @transform_14, window_bounds = array<i64: 1, 10>}, {pipeline_mode = #tpu.pipeline_mode<synchronous>, transform_indices = @transform_15, window_bounds = array<i64: 10, 1>}, {pipeline_mode = #tpu.pipeline_mode<synchronous>, transform_indices = @transform_16, window_bounds = array<i64: 1, 1>}, {transform_indices = @transform_17, window_bounds = array<i64: 2, 1>}]} {
    %c0 = arith.constant 0 : index
    %c0_0 = arith.constant 0 : index
    %0 = vector.load %arg1[%c0, %c0_0] : memref<2x640xf32, #tpu.memory_space<vmem>>, vector<2x640xf32>
    %c0_1 = arith.constant 0 : index
    %1 = memref.load %arg4[%c0_1] : memref<1xf32, #tpu.memory_space<smem>>
    %c0_2 = arith.constant 0 : index
    %2 = memref.load %arg3[%c0_2] : memref<3xf32, #tpu.memory_space<smem>>
    %3 = vector.broadcast %2 : f32 to vector<2x640xf32>
    %4 = arith.mulf %3, %0 : vector<2x640xf32>
    %5 = vector.broadcast %1 : f32 to vector<2x640xf32>
    %6 = arith.addf %5, %4 : vector<2x640xf32>
    %c1 = arith.constant 1 : index
    %7 = memref.load %arg3[%c1] : memref<3xf32, #tpu.memory_space<smem>>
    %c639_i32 = arith.constant 639 : i32
    %8 = tpu.dynamic_rotate %0 by %c639_i32 dim 1 : vector<2x640xf32>, i32 -> vector<2x640xf32>
    %9 = vector.broadcast %7 : f32 to vector<2x640xf32>
    %10 = arith.mulf %9, %8 : vector<2x640xf32>
    %11 = arith.addf %6, %10 : vector<2x640xf32>
    %c2 = arith.constant 2 : index
    %12 = memref.load %arg3[%c2] : memref<3xf32, #tpu.memory_space<smem>>
    %c638_i32 = arith.constant 638 : i32
    %13 = tpu.dynamic_rotate %0 by %c638_i32 dim 1 : vector<2x640xf32>, i32 -> vector<2x640xf32>
    %14 = vector.broadcast %12 : f32 to vector<2x640xf32>
    %15 = arith.mulf %14, %13 : vector<2x640xf32>
    %16 = arith.addf %11, %15 : vector<2x640xf32>
    %cst = arith.constant 0.000000e+00 : f32
    %17 = vector.broadcast %cst : f32 to vector<2x640xf32>
    %18 = arith.maximumf %16, %17 : vector<2x640xf32>
    %c639_i32_3 = arith.constant 639 : i32
    %19 = tpu.dynamic_rotate %18 by %c639_i32_3 dim 1 : vector<2x640xf32>, i32 -> vector<2x640xf32>
    %20 = arith.maximumf %18, %19 : vector<2x640xf32>
    %c0_4 = arith.constant 0 : index
    %21 = memref.load %arg6[%c0_4] : memref<1xf32, #tpu.memory_space<smem>>
    %c0_5 = arith.constant 0 : index
    %22 = memref.load %arg5[%c0_5] : memref<6xf32, #tpu.memory_space<smem>>
    %23 = vector.broadcast %22 : f32 to vector<2x640xf32>
    %24 = arith.mulf %23, %20 : vector<2x640xf32>
    %25 = vector.broadcast %21 : f32 to vector<2x640xf32>
    %26 = arith.addf %25, %24 : vector<2x640xf32>
    %c1_6 = arith.constant 1 : index
    %27 = memref.load %arg5[%c1_6] : memref<6xf32, #tpu.memory_space<smem>>
    %c638_i32_7 = arith.constant 638 : i32
    %28 = tpu.dynamic_rotate %20 by %c638_i32_7 dim 1 : vector<2x640xf32>, i32 -> vector<2x640xf32>
    %29 = vector.broadcast %27 : f32 to vector<2x640xf32>
    %30 = arith.mulf %29, %28 : vector<2x640xf32>
    %31 = arith.addf %26, %30 : vector<2x640xf32>
    %c2_8 = arith.constant 2 : index
    %32 = memref.load %arg5[%c2_8] : memref<6xf32, #tpu.memory_space<smem>>
    %c636_i32 = arith.constant 636 : i32
    %33 = tpu.dynamic_rotate %20 by %c636_i32 dim 1 : vector<2x640xf32>, i32 -> vector<2x640xf32>
    %34 = vector.broadcast %32 : f32 to vector<2x640xf32>
    %35 = arith.mulf %34, %33 : vector<2x640xf32>
    %36 = arith.addf %31, %35 : vector<2x640xf32>
    %c3 = arith.constant 3 : index
    %37 = memref.load %arg5[%c3] : memref<6xf32, #tpu.memory_space<smem>>
    %c634_i32 = arith.constant 634 : i32
    %38 = tpu.dynamic_rotate %20 by %c634_i32 dim 1 : vector<2x640xf32>, i32 -> vector<2x640xf32>
    %39 = vector.broadcast %37 : f32 to vector<2x640xf32>
    %40 = arith.mulf %39, %38 : vector<2x640xf32>
    %41 = arith.addf %36, %40 : vector<2x640xf32>
    %c4 = arith.constant 4 : index
    %42 = memref.load %arg5[%c4] : memref<6xf32, #tpu.memory_space<smem>>
    %c632_i32 = arith.constant 632 : i32
    %43 = tpu.dynamic_rotate %20 by %c632_i32 dim 1 : vector<2x640xf32>, i32 -> vector<2x640xf32>
    %44 = vector.broadcast %42 : f32 to vector<2x640xf32>
    %45 = arith.mulf %44, %43 : vector<2x640xf32>
    %46 = arith.addf %41, %45 : vector<2x640xf32>
    %c5 = arith.constant 5 : index
    %47 = memref.load %arg5[%c5] : memref<6xf32, #tpu.memory_space<smem>>
    %c630_i32 = arith.constant 630 : i32
    %48 = tpu.dynamic_rotate %20 by %c630_i32 dim 1 : vector<2x640xf32>, i32 -> vector<2x640xf32>
    %49 = vector.broadcast %47 : f32 to vector<2x640xf32>
    %50 = arith.mulf %49, %48 : vector<2x640xf32>
    %51 = arith.addf %46, %50 : vector<2x640xf32>
    %cst_9 = arith.constant 0.000000e+00 : f32
    %52 = vector.broadcast %cst_9 : f32 to vector<2x640xf32>
    %53 = arith.maximumf %51, %52 : vector<2x640xf32>
    %c638_i32_10 = arith.constant 638 : i32
    %54 = tpu.dynamic_rotate %53 by %c638_i32_10 dim 1 : vector<2x640xf32>, i32 -> vector<2x640xf32>
    %55 = arith.maximumf %53, %54 : vector<2x640xf32>
    %c0_11 = arith.constant 0 : index
    %c0_12 = arith.constant 0 : index
    %56 = vector.load %arg2[%c0_11, %c0_12] : memref<2x256xf32, #tpu.memory_space<vmem>>, vector<2x256xf32>
    %c0_13 = arith.constant 0 : index
    %57 = memref.load %arg8[%c0_13] : memref<1xf32, #tpu.memory_space<smem>>
    %c0_14 = arith.constant 0 : index
    %58 = memref.load %arg7[%c0_14] : memref<3xf32, #tpu.memory_space<smem>>
    %59 = vector.broadcast %58 : f32 to vector<2x256xf32>
    %60 = arith.mulf %59, %56 : vector<2x256xf32>
    %61 = vector.broadcast %57 : f32 to vector<2x256xf32>
    %62 = arith.addf %61, %60 : vector<2x256xf32>
    %c1_15 = arith.constant 1 : index
    %63 = memref.load %arg7[%c1_15] : memref<3xf32, #tpu.memory_space<smem>>
    %c255_i32 = arith.constant 255 : i32
    %64 = tpu.dynamic_rotate %56 by %c255_i32 dim 1 : vector<2x256xf32>, i32 -> vector<2x256xf32>
    %65 = vector.broadcast %63 : f32 to vector<2x256xf32>
    %66 = arith.mulf %65, %64 : vector<2x256xf32>
    %67 = arith.addf %62, %66 : vector<2x256xf32>
    %c2_16 = arith.constant 2 : index
    %68 = memref.load %arg7[%c2_16] : memref<3xf32, #tpu.memory_space<smem>>
    %c254_i32 = arith.constant 254 : i32
    %69 = tpu.dynamic_rotate %56 by %c254_i32 dim 1 : vector<2x256xf32>, i32 -> vector<2x256xf32>
    %70 = vector.broadcast %68 : f32 to vector<2x256xf32>
    %71 = arith.mulf %70, %69 : vector<2x256xf32>
    %72 = arith.addf %67, %71 : vector<2x256xf32>
    %cst_17 = arith.constant 0.000000e+00 : f32
    %73 = vector.broadcast %cst_17 : f32 to vector<2x256xf32>
    %74 = arith.maximumf %72, %73 : vector<2x256xf32>
    %c255_i32_18 = arith.constant 255 : i32
    %75 = tpu.dynamic_rotate %74 by %c255_i32_18 dim 1 : vector<2x256xf32>, i32 -> vector<2x256xf32>
    %76 = arith.maximumf %74, %75 : vector<2x256xf32>
    %c0_19 = arith.constant 0 : index
    %77 = memref.load %arg10[%c0_19] : memref<1xf32, #tpu.memory_space<smem>>
    %c0_20 = arith.constant 0 : index
    %78 = memref.load %arg9[%c0_20] : memref<4xf32, #tpu.memory_space<smem>>
    %79 = vector.broadcast %78 : f32 to vector<2x256xf32>
    %80 = arith.mulf %79, %76 : vector<2x256xf32>
    %81 = vector.broadcast %77 : f32 to vector<2x256xf32>
    %82 = arith.addf %81, %80 : vector<2x256xf32>
    %c1_21 = arith.constant 1 : index
    %83 = memref.load %arg9[%c1_21] : memref<4xf32, #tpu.memory_space<smem>>
    %c254_i32_22 = arith.constant 254 : i32
    %84 = tpu.dynamic_rotate %76 by %c254_i32_22 dim 1 : vector<2x256xf32>, i32 -> vector<2x256xf32>
    %85 = vector.broadcast %83 : f32 to vector<2x256xf32>
    %86 = arith.mulf %85, %84 : vector<2x256xf32>
    %87 = arith.addf %82, %86 : vector<2x256xf32>
    %c2_23 = arith.constant 2 : index
    %88 = memref.load %arg9[%c2_23] : memref<4xf32, #tpu.memory_space<smem>>
    %c252_i32 = arith.constant 252 : i32
    %89 = tpu.dynamic_rotate %76 by %c252_i32 dim 1 : vector<2x256xf32>, i32 -> vector<2x256xf32>
    %90 = vector.broadcast %88 : f32 to vector<2x256xf32>
    %91 = arith.mulf %90, %89 : vector<2x256xf32>
    %92 = arith.addf %87, %91 : vector<2x256xf32>
    %c3_24 = arith.constant 3 : index
    %93 = memref.load %arg9[%c3_24] : memref<4xf32, #tpu.memory_space<smem>>
    %c250_i32 = arith.constant 250 : i32
    %94 = tpu.dynamic_rotate %76 by %c250_i32 dim 1 : vector<2x256xf32>, i32 -> vector<2x256xf32>
    %95 = vector.broadcast %93 : f32 to vector<2x256xf32>
    %96 = arith.mulf %95, %94 : vector<2x256xf32>
    %97 = arith.addf %92, %96 : vector<2x256xf32>
    %cst_25 = arith.constant 0.000000e+00 : f32
    %98 = vector.broadcast %cst_25 : f32 to vector<2x256xf32>
    %99 = arith.maximumf %97, %98 : vector<2x256xf32>
    %c254_i32_26 = arith.constant 254 : i32
    %100 = tpu.dynamic_rotate %99 by %c254_i32_26 dim 1 : vector<2x256xf32>, i32 -> vector<2x256xf32>
    %101 = arith.maximumf %99, %100 : vector<2x256xf32>
    %c0_27 = arith.constant 0 : index
    %c0_28 = arith.constant 0 : index
    %102 = vector.load %arg11[%c0_27, %c0_28] : memref<640x90xf32, #tpu.memory_space<vmem>>, vector<640x90xf32>
    %cst_29 = arith.constant dense<0.000000e+00> : vector<2x90xf32>
    %103 = tpu.matmul %55, %102, %cst_29 {dimension_numbers = #tpu.dot_dimension_numbers<[1], [0], [0], [1], [0, 0, 1, 1], [], []>} : vector<2x640xf32>, vector<640x90xf32>, vector<2x90xf32> -> vector<2x90xf32>
    %c0_30 = arith.constant 0 : index
    %c0_31 = arith.constant 0 : index
    %104 = vector.load %arg12[%c0_30, %c0_31] : memref<256x90xf32, #tpu.memory_space<vmem>>, vector<256x90xf32>
    %cst_32 = arith.constant dense<0.000000e+00> : vector<2x90xf32>
    %105 = tpu.matmul %101, %104, %cst_32 {dimension_numbers = #tpu.dot_dimension_numbers<[1], [0], [0], [1], [0, 0, 1, 1], [], []>} : vector<2x256xf32>, vector<256x90xf32>, vector<2x90xf32> -> vector<2x90xf32>
    %106 = arith.addf %103, %105 : vector<2x90xf32>
    %c0_33 = arith.constant 0 : index
    %c0_34 = arith.constant 0 : index
    %107 = vector.load %arg13[%c0_33, %c0_34] : memref<1x90xf32, #tpu.memory_space<vmem>>, vector<1x90xf32>
    %108 = vector.broadcast %107 : vector<1x90xf32> to vector<2x90xf32>
    %109 = arith.addf %106, %108 : vector<2x90xf32>
    %cst_35 = arith.constant 0.000000e+00 : f32
    %110 = vector.broadcast %cst_35 : f32 to vector<2x90xf32>
    %111 = arith.maximumf %109, %110 : vector<2x90xf32>
    %c0_36 = arith.constant 0 : index
    %c0_37 = arith.constant 0 : index
    %112 = vector.load %arg14[%c0_36, %c0_37] : memref<90x10xf32, #tpu.memory_space<vmem>>, vector<90x10xf32>
    %cst_38 = arith.constant dense<0.000000e+00> : vector<2x10xf32>
    %113 = tpu.matmul %111, %112, %cst_38 {dimension_numbers = #tpu.dot_dimension_numbers<[1], [0], [0], [1], [0, 0, 1, 1], [], []>} : vector<2x90xf32>, vector<90x10xf32>, vector<2x10xf32> -> vector<2x10xf32>
    %c0_39 = arith.constant 0 : index
    %c0_40 = arith.constant 0 : index
    %114 = vector.load %arg15[%c0_39, %c0_40] : memref<1x10xf32, #tpu.memory_space<vmem>>, vector<1x10xf32>
    %115 = vector.broadcast %114 : vector<1x10xf32> to vector<2x10xf32>
    %116 = arith.addf %113, %115 : vector<2x10xf32>
    %cst_41 = arith.constant 0.000000e+00 : f32
    %117 = vector.broadcast %cst_41 : f32 to vector<2x10xf32>
    %118 = arith.maximumf %116, %117 : vector<2x10xf32>
    %c0_42 = arith.constant 0 : index
    %c0_43 = arith.constant 0 : index
    %119 = vector.load %arg16[%c0_42, %c0_43] : memref<10x1xf32, #tpu.memory_space<vmem>>, vector<10x1xf32>
    %cst_44 = arith.constant dense<0.000000e+00> : vector<2x1xf32>
    %120 = tpu.matmul %118, %119, %cst_44 {dimension_numbers = #tpu.dot_dimension_numbers<[1], [0], [0], [1], [0, 0, 1, 1], [], []>} : vector<2x10xf32>, vector<10x1xf32>, vector<2x1xf32> -> vector<2x1xf32>
    %c0_45 = arith.constant 0 : index
    %c0_46 = arith.constant 0 : index
    %121 = vector.load %arg17[%c0_45, %c0_46] : memref<1x1xf32, #tpu.memory_space<vmem>>, vector<1x1xf32>
    %122 = vector.broadcast %121 : vector<1x1xf32> to vector<2x1xf32>
    %123 = arith.addf %120, %122 : vector<2x1xf32>
    %cst_47 = arith.constant 0.000000e+00 : f32
    %124 = vector.broadcast %cst_47 : f32 to vector<2x1xf32>
    %125 = arith.subf %124, %123 : vector<2x1xf32>
    %126 = math.exp %125 : vector<2x1xf32>
    %cst_48 = arith.constant 1.000000e+00 : f32
    %127 = vector.broadcast %cst_48 : f32 to vector<2x1xf32>
    %128 = arith.addf %127, %126 : vector<2x1xf32>
    %cst_49 = arith.constant 1.000000e+00 : f32
    %129 = vector.broadcast %cst_49 : f32 to vector<2x1xf32>
    %130 = arith.divf %129, %128 : vector<2x1xf32>
    %c0_50 = arith.constant 0 : index
    %c0_51 = arith.constant 0 : index
    %131 = vector.load %arg18[%c0_50, %c0_51] : memref<2x1xf32, #tpu.memory_space<vmem>>, vector<2x1xf32>
    tpu.vector_store %arg18[%c0_50, %c0_51], %130 {strides = array<i32>} : memref<2x1xf32, #tpu.memory_space<vmem>>, vector<2x1xf32>,
    return
  }
  func.func @transform_0(%arg0: i32) -> (i32, i32) {
    %c0_i32 = arith.constant 0 : i32
    %c0_i32_0 = arith.constant 0 : i32
    return %arg0, %c0_i32 : i32, i32
  }
  func.func @transform_1(%arg0: i32) -> (i32, i32) {
    %c0_i32 = arith.constant 0 : i32
    %c0_i32_0 = arith.constant 0 : i32
    return %arg0, %c0_i32 : i32, i32
  }
  func.func @transform_2(%arg0: i32) -> i32 {
    %c0_i32 = arith.constant 0 : i32
    %c0_i32_0 = arith.constant 0 : i32
    return %c0_i32 : i32
  }
  func.func @transform_3(%arg0: i32) -> i32 {
    %c0_i32 = arith.constant 0 : i32
    %c0_i32_0 = arith.constant 0 : i32
    return %c0_i32 : i32
  }
  func.func @transform_4(%arg0: i32) -> i32 {
    %c0_i32 = arith.constant 0 : i32
    %c0_i32_0 = arith.constant 0 : i32
    return %c0_i32 : i32
  }
  func.func @transform_5(%arg0: i32) -> i32 {
    %c0_i32 = arith.constant 0 : i32
    %c0_i32_0 = arith.constant 0 : i32
    return %c0_i32 : i32
  }
  func.func @transform_6(%arg0: i32) -> i32 {
    %c0_i32 = arith.constant 0 : i32
    %c0_i32_0 = arith.constant 0 : i32
    return %c0_i32 : i32
  }
  func.func @transform_7(%arg0: i32) -> i32 {
    %c0_i32 = arith.constant 0 : i32
    %c0_i32_0 = arith.constant 0 : i32
    return %c0_i32 : i32
  }
  func.func @transform_8(%arg0: i32) -> i32 {
    %c0_i32 = arith.constant 0 : i32
    %c0_i32_0 = arith.constant 0 : i32
    return %c0_i32 : i32
  }
  func.func @transform_9(%arg0: i32) -> i32 {
    %c0_i32 = arith.constant 0 : i32
    %c0_i32_0 = arith.constant 0 : i32
    return %c0_i32 : i32
  }
  func.func @transform_10(%arg0: i32) -> (i32, i32) {
    %c0_i32 = arith.constant 0 : i32
    %c0_i32_0 = arith.constant 0 : i32
    %c0_i32_1 = arith.constant 0 : i32
    return %c0_i32, %c0_i32_0 : i32, i32
  }
  func.func @transform_11(%arg0: i32) -> (i32, i32) {
    %c0_i32 = arith.constant 0 : i32
    %c0_i32_0 = arith.constant 0 : i32
    %c0_i32_1 = arith.constant 0 : i32
    return %c0_i32, %c0_i32_0 : i32, i32
  }
  func.func @transform_12(%arg0: i32) -> (i32, i32) {
    %c0_i32 = arith.constant 0 : i32
    %c0_i32_0 = arith.constant 0 : i32
    %c0_i32_1 = arith.constant 0 : i32
    return %c0_i32, %c0_i32_0 : i32, i32
  }
  func.func @transform_13(%arg0: i32) -> (i32, i32) {
    %c0_i32 = arith.constant 0 : i32
    %c0_i32_0 = arith.constant 0 : i32
    %c0_i32_1 = arith.constant 0 : i32
    return %c0_i32, %c0_i32_0 : i32, i32
  }
  func.func @transform_14(%arg0: i32) -> (i32, i32) {
    %c0_i32 = arith.constant 0 : i32
    %c0_i32_0 = arith.constant 0 : i32
    %c0_i32_1 = arith.constant 0 : i32
    return %c0_i32, %c0_i32_0 : i32, i32
  }
  func.func @transform_15(%arg0: i32) -> (i32, i32) {
    %c0_i32 = arith.constant 0 : i32
    %c0_i32_0 = arith.constant 0 : i32
    %c0_i32_1 = arith.constant 0 : i32
    return %c0_i32, %c0_i32_0 : i32, i32
  }
  func.func @transform_16(%arg0: i32) -> (i32, i32) {
    %c0_i32 = arith.constant 0 : i32
    %c0_i32_0 = arith.constant 0 : i32
    %c0_i32_1 = arith.constant 0 : i32
    return %c0_i32, %c0_i32_0 : i32, i32
  }
  func.func @transform_17(%arg0: i32) -> (i32, i32) {
    %c0_i32 = arith.constant 0 : i32
    %c0_i32_0 = arith.constant 0 : i32
    return %arg0, %c0_i32 : i32, i32
  }
}

</mosaic_0001>

<llo_original>
// kernel: binding_cf_forward.1
$region0: #{binding_cf_forward.1}
  #allocation0 [shape = 'u32[]', space=smem, size = 0x4, offset = 0x4, fixed_abs, tag = 'smem constant byte address 0x4 - core index']
  #allocation1 [shape = 'u32[144,128]{1,0:T(1,128)}', space=vmem, size = 0x12000, scoped, tag = 'internal scratch']
  #allocation2 [shape = 'f32[1]{0:T(128)S(6)}', space=smem, size = 0x200, scoped, tag = 'scoped memory for binding_cf_forward.1']
  #allocation3 [shape = 'f32[1]{0:T(128)S(6)}', space=smem, size = 0x200, scoped, tag = 'scoped memory for binding_cf_forward.1']
  #allocation4 [shape = 'f32[1]{0:T(128)S(6)}', space=smem, size = 0x200, scoped, tag = 'scoped memory for binding_cf_forward.1']
  #allocation5 [shape = 'f32[1]{0:T(128)S(6)}', space=smem, size = 0x200, scoped, tag = 'scoped memory for binding_cf_forward.1']
  #allocation6 [shape = 'f32[1,1]{1,0:T(1,128)S(1)}', space=vmem, size = 0x200, scoped, tag = 'scoped memory for binding_cf_forward.1']
  %s0 = inlined_call_operand.vmem [shape: f32[2,640], index: 0, kind: input, shape index: {}]
  %s1 = inlined_call_operand.vmem [shape: f32[2,256], index: 1, kind: input, shape index: {}]
  %s2 = inlined_call_operand.vmem [shape: f32[3], index: 2, kind: input, shape index: {}]
  %s3 = inlined_call_operand.<no memory space> [shape: f32[1], index: 3, kind: input, shape index: {}]
  %s4 = inlined_call_operand.vmem [shape: f32[6], index: 4, kind: input, shape index: {}]
  %s5 = inlined_call_operand.<no memory space> [shape: f32[1], index: 5, kind: input, shape index: {}]
  %s6 = inlined_call_operand.vmem [shape: f32[3], index: 6, kind: input, shape index: {}]
  %s7 = inlined_call_operand.<no memory space> [shape: f32[1], index: 7, kind: input, shape index: {}]
  %s8 = inlined_call_operand.vmem [shape: f32[4], index: 8, kind: input, shape index: {}]
  %s9 = inlined_call_operand.<no memory space> [shape: f32[1], index: 9, kind: input, shape index: {}]
  %s10 = inlined_call_operand.vmem [shape: f32[640,90], index: 10, kind: input, shape index: {}]
  %s11 = inlined_call_operand.vmem [shape: f32[256,90], index: 11, kind: input, shape index: {}]
  %s12 = inlined_call_operand.vmem [shape: f32[1,90], index: 12, kind: input, shape index: {}]
  %s13 = inlined_call_operand.vmem [shape: f32[90,10], index: 13, kind: input, shape index: {}]
  %s14 = inlined_call_operand.vmem [shape: f32[1,10], index: 14, kind: input, shape index: {}]
  %s15 = inlined_call_operand.vmem [shape: f32[10,1], index: 15, kind: input, shape index: {}]
  %s16 = inlined_call_operand.<no memory space> [shape: f32[1,1], index: 16, kind: input, shape index: {}]
  %s17 = inlined_call_operand.vmem [shape: f32[2,1], index: 17, kind: output, shape index: {}]
  %s18 = sld [smem:[#allocation0]]
  $region94: #{binding_cf_forward.1} parent=0
    _
  %s20 = ssub.s32 1, %s18
  %s21 = scalar_select 0, %s20, %s18
  %22 = sst [smem:[#allocation2]] %s3
  %23 = sst [smem:[#allocation3]] %s5
  %24 = sst [smem:[#allocation4]] %s7
  %25 = sst [smem:[#allocation5]] %s9
  %v26 = vstv %s16
  %27 = vst [vmem:[#allocation6] sm:$0x1] %v26
  $region1: #{binding_cf_forward.1} parent=0
    #allocation7 [shape = 'u8[512]{0}', space=smem, size = 0x200, scoped, tag = 'input window, operand 2, single buffered']
    #allocation8 [shape = 's32[1]{0}', space=sflag, size = 0x4, scoped, tag = 'scoped memory for binding_cf_forward.1']
    #allocation9 [shape = 'u8[512]{0}', space=smem, size = 0x200, scoped, tag = 'input window, operand 4, single buffered']
    #allocation10 [shape = 's32[1]{0}', space=sflag, size = 0x4, scoped, tag = 'scoped memory for binding_cf_forward.1']
    #allocation11 [shape = 'u8[512]{0}', space=smem, size = 0x200, scoped, tag = 'input window, operand 6, single buffered']
    #allocation12 [shape = 'u8[512]{0}', space=smem, size = 0x200, scoped, tag = 'input window, operand 8, single buffered']
    #allocation13 [shape = 's32[1]{0}', space=sflag, size = 0x4, scoped, tag = 'scoped memory for binding_cf_forward.1']
    %28 = vsyncpa [#allocation8], 0
    %29 = vsyncpa [#allocation10], 0
    %30 = vsyncpa [#allocation13], 0
    // Predicated region
    $region2: #{binding_cf_forward.1} parent=1 // pred_check
      _
    $region3: #{binding_cf_forward.1} parent=1 // pred_check_branch
      %32 = sbr.rel (0) target = $region5
    $region4: #{binding_cf_forward.1} parent=1 // pred_region
      _
    $region5: #{binding_cf_forward.1} parent=1 // pred_fallthru
      _
    // Predicated region
    $region6: #{binding_cf_forward.1} parent=1 // pred_check
      _
    $region7: #{binding_cf_forward.1} parent=1 // pred_check_branch
      %34 = sbr.rel (0) target = $region9
    $region8: #{binding_cf_forward.1} parent=1 // pred_region
      _
    $region9: #{binding_cf_forward.1} parent=1 // pred_fallthru
      _
    // Predicated region
    $region10: #{binding_cf_forward.1} parent=1 // pred_check
      _
    $region11: #{binding_cf_forward.1} parent=1 // pred_check_branch
      %36 = sbr.rel (0) target = $region13
    $region12: #{binding_cf_forward.1} parent=1 // pred_region
      %s38 = ssub.s32 16, 16
      %39 = vsyncadd [#allocation8], %s38
      %s41 = sshll.u32 %s2, 4
      %s42 = int_to_ptr.vmem [resolvable:$true] %s41
      %44 = dma.vmem_to_smem %s42, 16, [#allocation7], [#allocation8]
    $region13: #{binding_cf_forward.1} parent=1 // pred_fallthru
      _
    // Predicated region
    $region14: #{binding_cf_forward.1} parent=1 // pred_check
      _
    $region15: #{binding_cf_forward.1} parent=1 // pred_check_branch
      %46 = sbr.rel (0) target = $region17
    $region16: #{binding_cf_forward.1} parent=1 // pred_region
      _
    $region17: #{binding_cf_forward.1} parent=1 // pred_fallthru
      _
    // Predicated region
    $region18: #{binding_cf_forward.1} parent=1 // pred_check
      _
    $region19: #{binding_cf_forward.1} parent=1 // pred_check_branch
      %48 = sbr.rel (0) target = $region21
    $region20: #{binding_cf_forward.1} parent=1 // pred_region
      %s50 = ssub.s32 16, 16
      %51 = vsyncadd [#allocation10], %s50
      %s53 = sshll.u32 %s4, 4
      %s54 = int_to_ptr.vmem [resolvable:$true] %s53
      %56 = dma.vmem_to_smem %s54, 16, [#allocation9], [#allocation10]
    $region21: #{binding_cf_forward.1} parent=1 // pred_fallthru
      _
    // Predicated region
    $region22: #{binding_cf_forward.1} parent=1 // pred_check
      _
    $region23: #{binding_cf_forward.1} parent=1 // pred_check_branch
      %58 = sbr.rel (0) target = $region25
    $region24: #{binding_cf_forward.1} parent=1 // pred_region
      _
    $region25: #{binding_cf_forward.1} parent=1 // pred_fallthru
      _
    // Predicated region
    $region26: #{binding_cf_forward.1} parent=1 // pred_check
      _
    $region27: #{binding_cf_forward.1} parent=1 // pred_check_branch
      %60 = sbr.rel (0) target = $region29
    $region28: #{binding_cf_forward.1} parent=1 // pred_region
      %s62 = ssub.s32 16, 16
      %63 = vsyncadd [#allocation10], %s62
      %s65 = sshll.u32 %s6, 4
      %s66 = int_to_ptr.vmem [resolvable:$true] %s65
      %68 = dma.vmem_to_smem %s66, 16, [#allocation11], [#allocation10]
    $region29: #{binding_cf_forward.1} parent=1 // pred_fallthru
      _
    // Predicated region
    $region30: #{binding_cf_forward.1} parent=1 // pred_check
      _
    $region31: #{binding_cf_forward.1} parent=1 // pred_check_branch
      %70 = sbr.rel (0) target = $region33
    $region32: #{binding_cf_forward.1} parent=1 // pred_region
      _
    $region33: #{binding_cf_forward.1} parent=1 // pred_fallthru
      _
    // Predicated region
    $region34: #{binding_cf_forward.1} parent=1 // pred_check
      _
    $region35: #{binding_cf_forward.1} parent=1 // pred_check_branch
      %72 = sbr.rel (0) target = $region37
    $region36: #{binding_cf_forward.1} parent=1 // pred_region
      %s74 = ssub.s32 16, 16
      %75 = vsyncadd [#allocation13], %s74
      %s77 = sshll.u32 %s8, 4
      %s78 = int_to_ptr.vmem [resolvable:$true] %s77
      %80 = dma.vmem_to_smem %s78, 16, [#allocation12], [#allocation13]
    $region37: #{binding_cf_forward.1} parent=1 // pred_fallthru
      _
    // Predicated region
    $region38: #{binding_cf_forward.1} parent=1 // pred_check
      _
    $region39: #{binding_cf_forward.1} parent=1 // pred_check_branch
      %82 = sbr.rel (0) target = $region41
    $region40: #{binding_cf_forward.1} parent=1 // pred_region
      _
    $region41: #{binding_cf_forward.1} parent=1 // pred_fallthru
      _
    // Predicated region
    $region42: #{binding_cf_forward.1} parent=1 // pred_check
      _
    $region43: #{binding_cf_forward.1} parent=1 // pred_check_branch
      %84 = sbr.rel (0) target = $region45
    $region44: #{binding_cf_forward.1} parent=1 // pred_region
      _
    $region45: #{binding_cf_forward.1} parent=1 // pred_fallthru
      _
    // Predicated region
    $region46: #{binding_cf_forward.1} parent=1 // pred_check
      _
    $region47: #{binding_cf_forward.1} parent=1 // pred_check_branch
      %86 = sbr.rel (0) target = $region49
    $region48: #{binding_cf_forward.1} parent=1 // pred_region
      _
    $region49: #{binding_cf_forward.1} parent=1 // pred_fallthru
      _
    // Predicated region
    $region50: #{binding_cf_forward.1} parent=1 // pred_check
      _
    $region51: #{binding_cf_forward.1} parent=1 // pred_check_branch
      %88 = sbr.rel (0) target = $region53
    $region52: #{binding_cf_forward.1} parent=1 // pred_region
      _
    $region53: #{binding_cf_forward.1} parent=1 // pred_fallthru
      _
    // Predicated region
    $region54: #{binding_cf_forward.1} parent=1 // pred_check
      _
    $region55: #{binding_cf_forward.1} parent=1 // pred_check_branch
      %90 = sbr.rel (0) target = $region57
    $region56: #{binding_cf_forward.1} parent=1 // pred_region
      _
    $region57: #{binding_cf_forward.1} parent=1 // pred_fallthru
      _
    // Predicated region
    $region58: #{binding_cf_forward.1} parent=1 // pred_check
      _
    $region59: #{binding_cf_forward.1} parent=1 // pred_check_branch
      %92 = sbr.rel (0) target = $region61
    $region60: #{binding_cf_forward.1} parent=1 // pred_region
      _
    $region61: #{binding_cf_forward.1} parent=1 // pred_fallthru
      _
    // Predicated region
    $region62: #{binding_cf_forward.1} parent=1 // pred_check
      _
    $region63: #{binding_cf_forward.1} parent=1 // pred_check_branch
      %94 = sbr.rel (0) target = $region65
    $region64: #{binding_cf_forward.1} parent=1 // pred_region
      _
    $region65: #{binding_cf_forward.1} parent=1 // pred_fallthru
      _
    // Predicated region
    $region66: #{binding_cf_forward.1} parent=1 // pred_check
      _
    $region67: #{binding_cf_forward.1} parent=1 // pred_check_branch
      %96 = sbr.rel (0) target = $region69
    $region68: #{binding_cf_forward.1} parent=1 // pred_region
      _
    $region69: #{binding_cf_forward.1} parent=1 // pred_fallthru
      _
    // Predicated region
    $region70: #{binding_cf_forward.1} parent=1 // pred_check
      _
    $region71: #{binding_cf_forward.1} parent=1 // pred_check_branch
      %98 = sbr.rel (0) target = $region73
    $region72: #{binding_cf_forward.1} parent=1 // pred_region
      %99 = dma.done [#allocation8], 16
    $region73: #{binding_cf_forward.1} parent=1 // pred_fallthru
      _
    // Predicated region
    $region74: #{binding_cf_forward.1} parent=1 // pred_check
      _
    $region75: #{binding_cf_forward.1} parent=1 // pred_check_branch
      %101 = sbr.rel (0) target = $region77
    $region76: #{binding_cf_forward.1} parent=1 // pred_region
      %102 = dma.done [#allocation10], 16
    $region77: #{binding_cf_forward.1} parent=1 // pred_fallthru
      _
    // Predicated region
    $region78: #{binding_cf_forward.1} parent=1 // pred_check
      _
    $region79: #{binding_cf_forward.1} parent=1 // pred_check_branch
      %104 = sbr.rel (0) target = $region81
    $region80: #{binding_cf_forward.1} parent=1 // pred_region
      %105 = dma.done [#allocation10], 16
    $region81: #{binding_cf_forward.1} parent=1 // pred_fallthru
      _
    // Predicated region
    $region82: #{binding_cf_forward.1} parent=1 // pred_check
      _
    $region83: #{binding_cf_forward.1} parent=1 // pred_check_branch
      %107 = sbr.rel (0) target = $region85
    $region84: #{binding_cf_forward.1} parent=1 // pred_region
      %108 = dma.done [#allocation13], 16
    $region85: #{binding_cf_forward.1} parent=1 // pred_fallthru
      _
    %109 = sfence
    %v110 = vld [vmem:[%s0] sm:$0xff]
    %v111 = vld [vmem:[%s0 + $0x8] sm:$0x3]
    %s112 = sld [smem:[#allocation2]]
    %s113 = sld [smem:[#allocation7]]
    %v114 = vstv %s113
    %v115 = vmul.f32 %v114, %v110
    %v116 = vmul.f32 %v114, %v111
    %v117 = vstv %s112
    %v118 = vadd.f32 %v117, %v115
    %v119 = vadd.f32 %v117, %v116
    %s120 = sld [smem:[#allocation7 + $0x1]]
    %v123 = vcombine.high %v110, %v110
    %v125 = vunpack.c.l.s4 1983009808
    %v126 = vunpack.c.0.s8 %v125
    %v127 = vlaneseq
    %v128 = vshrl.u32 %v127, 7
    %v129 = vsub.s32 %v126, %v128
    %v130 = vrot.slane %v110, %v129
    %v132 = vunpack.c.l.s4 1983009808
    %v133 = vunpack.c.0.s8 %v132
    %v134 = vlaneseq
    %v135 = vshrl.u32 %v134, 7
    %v136 = vsub.s32 %v133, %v135
    %v137 = vrot.slane %v123, %v136
    %v138 = vcombine.high %v130, %v130
    %v139 = vcombine.high %v137, %v137
    %v141 = vunpack.c.l.s4 1983009808
    %v142 = vunpack.c.0.s8 %v141
    %v143 = vlaneseq
    %v144 = vshrl.u32 %v143, 7
    %v145 = vsub.s32 %v142, %v144
    %v146 = vrot.slane %v111, %v145
    %152 = vrot.lane.b32.xlu0 %v130, 127
    %v153 = vpop.permute.xlu0 %152
    %154 = vrot.lane.b32.xlu0 %v138, 127
    %v155 = vpop.permute.xlu0 %154
    %156 = vrot.lane.b32.xlu0 %v137, 127
    %v157 = vpop.permute.xlu0 %156
    %158 = vrot.lane.b32.xlu0 %v139, 127
    %v159 = vpop.permute.xlu0 %158
    %160 = vrot.lane.b32.xlu0 %v146, 127
    %v161 = vpop.permute.xlu0 %160
    %v162 = vlaneseq
    %v163 = vand.u32 %v162, 127
    %vm164 = vcmp.lt.s32.totalorder %v163, 127
    %v165 = vsel %vm164, %v159, %v161
    %v166 = vsel %vm164, %v157, %v159
    %v167 = vsel %vm164, %v155, %v157
    %v168 = vsel %vm164, %v153, %v155
    %v169 = vsel %vm164, %v161, %v153
    %v170 = vstv %s120
    %v171 = vmul.f32 %v170, %v168
    %v172 = vmul.f32 %v170, %v167
    %v173 = vmul.f32 %v170, %v166
    %v174 = vmul.f32 %v170, %v165
    %v175 = vmul.f32 %v170, %v169
    %v181 = vcombine.low %v171, %v172
    %v182 = vcombine.low %v173, %v174
    %v184 = vunpack.c.l.s4 1983009808
    %v185 = vunpack.c.0.s8 %v184
    %v186 = vlaneseq
    %v187 = vshrl.u32 %v186, 7
    %v188 = vsub.s32 %v185, %v187
    %v189 = vrot.slane %v181, %v188
    %v191 = vunpack.c.l.s4 1983009808
    %v192 = vunpack.c.0.s8 %v191
    %v193 = vlaneseq
    %v194 = vshrl.u32 %v193, 7
    %v195 = vsub.s32 %v192, %v194
    %v196 = vrot.slane %v182, %v195
    %v197 = vcombine.low %v189, %v196
    %v199 = vunpack.c.l.s4 1983009808
    %v200 = vunpack.c.0.s8 %v199
    %v201 = vlaneseq
    %v202 = vshrl.u32 %v201, 7
    %v203 = vsub.s32 %v200, %v202
    %v204 = vrot.slane %v175, %v203
    %v207 = vadd.f32 %v118, %v197
    %v208 = vadd.f32 %v119, %v204
    %s209 = sld [smem:[#allocation7 + $0x2]]
    %210 = vrot.lane.b32.xlu0 %v130, 126
    %v211 = vpop.permute.xlu0 %210
    %212 = vrot.lane.b32.xlu0 %v138, 126
    %v213 = vpop.permute.xlu0 %212
    %214 = vrot.lane.b32.xlu0 %v137, 126
    %v215 = vpop.permute.xlu0 %214
    %216 = vrot.lane.b32.xlu0 %v139, 126
    %v217 = vpop.permute.xlu0 %216
    %218 = vrot.lane.b32.xlu0 %v146, 126
    %v219 = vpop.permute.xlu0 %218
    %vm220 = vcmp.lt.s32.totalorder %v163, 126
    %v221 = vsel %vm220, %v217, %v219
    %v222 = vsel %vm220, %v215, %v217
    %v223 = vsel %vm220, %v213, %v215
    %v224 = vsel %vm220, %v211, %v213
    %v225 = vsel %vm220, %v219, %v211
    %v226 = vstv %s209
    %v227 = vmul.f32 %v226, %v224
    %v228 = vmul.f32 %v226, %v223
    %v229 = vmul.f32 %v226, %v222
    %v230 = vmul.f32 %v226, %v221
    %v231 = vmul.f32 %v226, %v225
    %v237 = vcombine.low %v227, %v228
    %v238 = vcombine.low %v229, %v230
    %v240 = vunpack.c.l.s4 1983009808
    %v241 = vunpack.c.0.s8 %v240
    %v242 = vlaneseq
    %v243 = vshrl.u32 %v242, 7
    %v244 = vsub.s32 %v241, %v243
    %v245 = vrot.slane %v237, %v244
    %v247 = vunpack.c.l.s4 1983009808
    %v248 = vunpack.c.0.s8 %v247
    %v249 = vlaneseq
    %v250 = vshrl.u32 %v249, 7
    %v251 = vsub.s32 %v248, %v250
    %v252 = vrot.slane %v238, %v251
    %v253 = vcombine.low %v245, %v252
    %v255 = vunpack.c.l.s4 1983009808
    %v256 = vunpack.c.0.s8 %v255
    %v257 = vlaneseq
    %v258 = vshrl.u32 %v257, 7
    %v259 = vsub.s32 %v256, %v258
    %v260 = vrot.slane %v231, %v259
    %v263 = vadd.f32 %v207, %v253
    %v264 = vadd.f32 %v208, %v260
    %v265 = vmax.f32 %v263, 0.0
    %v266 = vmax.f32 %v264, 0.0
    %v269 = vcombine.high %v265, %v265
    %v271 = vunpack.c.l.s4 1983009808
    %v272 = vunpack.c.0.s8 %v271
    %v273 = vlaneseq
    %v274 = vshrl.u32 %v273, 7
    %v275 = vsub.s32 %v272, %v274
    %v276 = vrot.slane %v265, %v275
    %v278 = vunpack.c.l.s4 1983009808
    %v279 = vunpack.c.0.s8 %v278
    %v280 = vlaneseq
    %v281 = vshrl.u32 %v280, 7
    %v282 = vsub.s32 %v279, %v281
    %v283 = vrot.slane %v269, %v282
    %v284 = vcombine.high %v276, %v276
    %v285 = vcombine.high %v283, %v283
    %v287 = vunpack.c.l.s4 1983009808
    %v288 = vunpack.c.0.s8 %v287
    %v289 = vlaneseq
    %v290 = vshrl.u32 %v289, 7
    %v291 = vsub.s32 %v288, %v290
    %v292 = vrot.slane %v266, %v291
    %298 = vrot.lane.b32.xlu0 %v276, 127
    %v299 = vpop.permute.xlu0 %298
    %300 = vrot.lane.b32.xlu0 %v284, 127
    %v301 = vpop.permute.xlu0 %300
    %302 = vrot.lane.b32.xlu0 %v283, 127
    %v303 = vpop.permute.xlu0 %302
    %304 = vrot.lane.b32.xlu0 %v285, 127
    %v305 = vpop.permute.xlu0 %304
    %306 = vrot.lane.b32.xlu0 %v292, 127
    %v307 = vpop.permute.xlu0 %306
    %v308 = vsel %vm164, %v305, %v307
    %v309 = vsel %vm164, %v303, %v305
    %v310 = vsel %vm164, %v301, %v303
    %v311 = vsel %vm164, %v299, %v301
    %v312 = vsel %vm164, %v307, %v299
    %v318 = vcombine.low %v311, %v310
    %v319 = vcombine.low %v309, %v308
    %v321 = vunpack.c.l.s4 1983009808
    %v322 = vunpack.c.0.s8 %v321
    %v323 = vlaneseq
    %v324 = vshrl.u32 %v323, 7
    %v325 = vsub.s32 %v322, %v324
    %v326 = vrot.slane %v318, %v325
    %v328 = vunpack.c.l.s4 1983009808
    %v329 = vunpack.c.0.s8 %v328
    %v330 = vlaneseq
    %v331 = vshrl.u32 %v330, 7
    %v332 = vsub.s32 %v329, %v331
    %v333 = vrot.slane %v319, %v332
    %v334 = vcombine.low %v326, %v333
    %v336 = vunpack.c.l.s4 1983009808
    %v337 = vunpack.c.0.s8 %v336
    %v338 = vlaneseq
    %v339 = vshrl.u32 %v338, 7
    %v340 = vsub.s32 %v337, %v339
    %v341 = vrot.slane %v312, %v340
    %v344 = vmax.f32 %v265, %v334
    %v345 = vmax.f32 %v266, %v341
    %s346 = sld [smem:[#allocation3]]
    %s347 = sld [smem:[#allocation9]]
    %v348 = vstv %s347
    %v349 = vmul.f32 %v348, %v344
    %v350 = vmul.f32 %v348, %v345
    %v351 = vstv %s346
    %v352 = vadd.f32 %v351, %v349
    %v353 = vadd.f32 %v351, %v350
    %s354 = sld [smem:[#allocation9 + $0x1]]
    %v357 = vcombine.high %v344, %v344
    %v359 = vunpack.c.l.s4 1983009808
    %v360 = vunpack.c.0.s8 %v359
    %v361 = vlaneseq
    %v362 = vshrl.u32 %v361, 7
    %v363 = vsub.s32 %v360, %v362
    %v364 = vrot.slane %v344, %v363
    %v366 = vunpack.c.l.s4 1983009808
    %v367 = vunpack.c.0.s8 %v366
    %v368 = vlaneseq
    %v369 = vshrl.u32 %v368, 7
    %v370 = vsub.s32 %v367, %v369
    %v371 = vrot.slane %v357, %v370
    %v372 = vcombine.high %v364, %v364
    %v373 = vcombine.high %v371, %v371
    %v375 = vunpack.c.l.s4 1983009808
    %v376 = vunpack.c.0.s8 %v375
    %v377 = vlaneseq
    %v378 = vshrl.u32 %v377, 7
    %v379 = vsub.s32 %v376, %v378
    %v380 = vrot.slane %v345, %v379
    %386 = vrot.lane.b32.xlu0 %v364, 126
    %v387 = vpop.permute.xlu0 %386
    %388 = vrot.lane.b32.xlu0 %v372, 126
    %v389 = vpop.permute.xlu0 %388
    %390 = vrot.lane.b32.xlu0 %v371, 126
    %v391 = vpop.permute.xlu0 %390
    %392 = vrot.lane.b32.xlu0 %v373, 126
    %v393 = vpop.permute.xlu0 %392
    %394 = vrot.lane.b32.xlu0 %v380, 126
    %v395 = vpop.permute.xlu0 %394
    %v396 = vsel %vm220, %v393, %v395
    %v397 = vsel %vm220, %v391, %v393
    %v398 = vsel %vm220, %v389, %v391
    %v399 = vsel %vm220, %v387, %v389
    %v400 = vsel %vm220, %v395, %v387
    %v401 = vstv %s354
    %v402 = vmul.f32 %v401, %v399
    %v403 = vmul.f32 %v401, %v398
    %v404 = vmul.f32 %v401, %v397
    %v405 = vmul.f32 %v401, %v396
    %v406 = vmul.f32 %v401, %v400
    %v412 = vcombine.low %v402, %v403
    %v413 = vcombine.low %v404, %v405
    %v415 = vunpack.c.l.s4 1983009808
    %v416 = vunpack.c.0.s8 %v415
    %v417 = vlaneseq
    %v418 = vshrl.u32 %v417, 7
    %v419 = vsub.s32 %v416, %v418
    %v420 = vrot.slane %v412, %v419
    %v422 = vunpack.c.l.s4 1983009808
    %v423 = vunpack.c.0.s8 %v422
    %v424 = vlaneseq
    %v425 = vshrl.u32 %v424, 7
    %v426 = vsub.s32 %v423, %v425
    %v427 = vrot.slane %v413, %v426
    %v428 = vcombine.low %v420, %v427
    %v430 = vunpack.c.l.s4 1983009808
    %v431 = vunpack.c.0.s8 %v430
    %v432 = vlaneseq
    %v433 = vshrl.u32 %v432, 7
    %v434 = vsub.s32 %v431, %v433
    %v435 = vrot.slane %v406, %v434
    %v438 = vadd.f32 %v352, %v428
    %v439 = vadd.f32 %v353, %v435
    %s440 = sld [smem:[#allocation9 + $0x2]]
    %441 = vrot.lane.b32.xlu0 %v364, 124
    %v442 = vpop.permute.xlu0 %441
    %443 = vrot.lane.b32.xlu0 %v372, 124
    %v444 = vpop.permute.xlu0 %443
    %445 = vrot.lane.b32.xlu0 %v371, 124
    %v446 = vpop.permute.xlu0 %445
    %447 = vrot.lane.b32.xlu0 %v373, 124
    %v448 = vpop.permute.xlu0 %447
    %449 = vrot.lane.b32.xlu0 %v380, 124
    %v450 = vpop.permute.xlu0 %449
    %vm451 = vcmp.lt.s32.totalorder %v163, 124
    %v452 = vsel %vm451, %v448, %v450
    %v453 = vsel %vm451, %v446, %v448
    %v454 = vsel %vm451, %v444, %v446
    %v455 = vsel %vm451, %v442, %v444
    %v456 = vsel %vm451, %v450, %v442
    %v457 = vstv %s440
    %v458 = vmul.f32 %v457, %v455
    %v459 = vmul.f32 %v457, %v454
    %v460 = vmul.f32 %v457, %v453
    %v461 = vmul.f32 %v457, %v452
    %v462 = vmul.f32 %v457, %v456
    %v468 = vcombine.low %v458, %v459
    %v469 = vcombine.low %v460, %v461
    %v471 = vunpack.c.l.s4 1983009808
    %v472 = vunpack.c.0.s8 %v471
    %v473 = vlaneseq
    %v474 = vshrl.u32 %v473, 7
    %v475 = vsub.s32 %v472, %v474
    %v476 = vrot.slane %v468, %v475
    %v478 = vunpack.c.l.s4 1983009808
    %v479 = vunpack.c.0.s8 %v478
    %v480 = vlaneseq
    %v481 = vshrl.u32 %v480, 7
    %v482 = vsub.s32 %v479, %v481
    %v483 = vrot.slane %v469, %v482
    %v484 = vcombine.low %v476, %v483
    %v486 = vunpack.c.l.s4 1983009808
    %v487 = vunpack.c.0.s8 %v486
    %v488 = vlaneseq
    %v489 = vshrl.u32 %v488, 7
    %v490 = vsub.s32 %v487, %v489
    %v491 = vrot.slane %v462, %v490
    %v494 = vadd.f32 %v438, %v484
    %v495 = vadd.f32 %v439, %v491
    %s496 = sld [smem:[#allocation9 + $0x3]]
    %497 = vrot.lane.b32.xlu0 %v364, 122
    %v498 = vpop.permute.xlu0 %497
    %499 = vrot.lane.b32.xlu0 %v372, 122
    %v500 = vpop.permute.xlu0 %499
    %501 = vrot.lane.b32.xlu0 %v371, 122
    %v502 = vpop.permute.xlu0 %501
    %503 = vrot.lane.b32.xlu0 %v373, 122
    %v504 = vpop.permute.xlu0 %503
    %505 = vrot.lane.b32.xlu0 %v380, 122
    %v506 = vpop.permute.xlu0 %505
    %vm507 = vcmp.lt.s32.totalorder %v163, 122
    %v508 = vsel %vm507, %v504, %v506
    %v509 = vsel %vm507, %v502, %v504
    %v510 = vsel %vm507, %v500, %v502
    %v511 = vsel %vm507, %v498, %v500
    %v512 = vsel %vm507, %v506, %v498
    %v513 = vstv %s496
    %v514 = vmul.f32 %v513, %v511
    %v515 = vmul.f32 %v513, %v510
    %v516 = vmul.f32 %v513, %v509
    %v517 = vmul.f32 %v513, %v508
    %v518 = vmul.f32 %v513, %v512
    %v524 = vcombine.low %v514, %v515
    %v525 = vcombine.low %v516, %v517
    %v527 = vunpack.c.l.s4 1983009808
    %v528 = vunpack.c.0.s8 %v527
    %v529 = vlaneseq
    %v530 = vshrl.u32 %v529, 7
    %v531 = vsub.s32 %v528, %v530
    %v532 = vrot.slane %v524, %v531
    %v534 = vunpack.c.l.s4 1983009808
    %v535 = vunpack.c.0.s8 %v534
    %v536 = vlaneseq
    %v537 = vshrl.u32 %v536, 7
    %v538 = vsub.s32 %v535, %v537
    %v539 = vrot.slane %v525, %v538
    %v540 = vcombine.low %v532, %v539
    %v542 = vunpack.c.l.s4 1983009808
    %v543 = vunpack.c.0.s8 %v542
    %v544 = vlaneseq
    %v545 = vshrl.u32 %v544, 7
    %v546 = vsub.s32 %v543, %v545
    %v547 = vrot.slane %v518, %v546
    %v550 = vadd.f32 %v494, %v540
    %v551 = vadd.f32 %v495, %v547
    %s552 = sld [smem:[#allocation9 + $0x4]]
    %553 = vrot.lane.b32.xlu0 %v364, 120
    %v554 = vpop.permute.xlu0 %553
    %555 = vrot.lane.b32.xlu0 %v372, 120
    %v556 = vpop.permute.xlu0 %555
    %557 = vrot.lane.b32.xlu0 %v371, 120
    %v558 = vpop.permute.xlu0 %557
    %559 = vrot.lane.b32.xlu0 %v373, 120
    %v560 = vpop.permute.xlu0 %559
    %561 = vrot.lane.b32.xlu0 %v380, 120
    %v562 = vpop.permute.xlu0 %561
    %vm563 = vcmp.lt.s32.totalorder %v163, 120
    %v564 = vsel %vm563, %v560, %v562
    %v565 = vsel %vm563, %v558, %v560
    %v566 = vsel %vm563, %v556, %v558
    %v567 = vsel %vm563, %v554, %v556
    %v568 = vsel %vm563, %v562, %v554
    %v569 = vstv %s552
    %v570 = vmul.f32 %v569, %v567
    %v571 = vmul.f32 %v569, %v566
    %v572 = vmul.f32 %v569, %v565
    %v573 = vmul.f32 %v569, %v564
    %v574 = vmul.f32 %v569, %v568
    %v580 = vcombine.low %v570, %v571
    %v581 = vcombine.low %v572, %v573
    %v583 = vunpack.c.l.s4 1983009808
    %v584 = vunpack.c.0.s8 %v583
    %v585 = vlaneseq
    %v586 = vshrl.u32 %v585, 7
    %v587 = vsub.s32 %v584, %v586
    %v588 = vrot.slane %v580, %v587
    %v590 = vunpack.c.l.s4 1983009808
    %v591 = vunpack.c.0.s8 %v590
    %v592 = vlaneseq
    %v593 = vshrl.u32 %v592, 7
    %v594 = vsub.s32 %v591, %v593
    %v595 = vrot.slane %v581, %v594
    %v596 = vcombine.low %v588, %v595
    %v598 = vunpack.c.l.s4 1983009808
    %v599 = vunpack.c.0.s8 %v598
    %v600 = vlaneseq
    %v601 = vshrl.u32 %v600, 7
    %v602 = vsub.s32 %v599, %v601
    %v603 = vrot.slane %v574, %v602
    %v606 = vadd.f32 %v550, %v596
    %v607 = vadd.f32 %v551, %v603
    %s608 = sld [smem:[#allocation9 + $0x5]]
    %609 = vrot.lane.b32.xlu0 %v364, 118
    %v610 = vpop.permute.xlu0 %609
    %611 = vrot.lane.b32.xlu0 %v372, 118
    %v612 = vpop.permute.xlu0 %611
    %613 = vrot.lane.b32.xlu0 %v371, 118
    %v614 = vpop.permute.xlu0 %613
    %615 = vrot.lane.b32.xlu0 %v373, 118
    %v616 = vpop.permute.xlu0 %615
    %617 = vrot.lane.b32.xlu0 %v380, 118
    %v618 = vpop.permute.xlu0 %617
    %vm619 = vcmp.lt.s32.totalorder %v163, 118
    %v620 = vsel %vm619, %v616, %v618
    %v621 = vsel %vm619, %v614, %v616
    %v622 = vsel %vm619, %v612, %v614
    %v623 = vsel %vm619, %v610, %v612
    %v624 = vsel %vm619, %v618, %v610
    %v625 = vstv %s608
    %v626 = vmul.f32 %v625, %v623
    %v627 = vmul.f32 %v625, %v622
    %v628 = vmul.f32 %v625, %v621
    %v629 = vmul.f32 %v625, %v620
    %v630 = vmul.f32 %v625, %v624
    %v636 = vcombine.low %v626, %v627
    %v637 = vcombine.low %v628, %v629
    %v639 = vunpack.c.l.s4 1983009808
    %v640 = vunpack.c.0.s8 %v639
    %v641 = vlaneseq
    %v642 = vshrl.u32 %v641, 7
    %v643 = vsub.s32 %v640, %v642
    %v644 = vrot.slane %v636, %v643
    %v646 = vunpack.c.l.s4 1983009808
    %v647 = vunpack.c.0.s8 %v646
    %v648 = vlaneseq
    %v649 = vshrl.u32 %v648, 7
    %v650 = vsub.s32 %v647, %v649
    %v651 = vrot.slane %v637, %v650
    %v652 = vcombine.low %v644, %v651
    %v654 = vunpack.c.l.s4 1983009808
    %v655 = vunpack.c.0.s8 %v654
    %v656 = vlaneseq
    %v657 = vshrl.u32 %v656, 7
    %v658 = vsub.s32 %v655, %v657
    %v659 = vrot.slane %v630, %v658
    %v662 = vadd.f32 %v606, %v652
    %v663 = vadd.f32 %v607, %v659
    %v664 = vmax.f32 %v662, 0.0
    %v665 = vmax.f32 %v663, 0.0
    %v668 = vcombine.high %v664, %v664
    %v670 = vunpack.c.l.s4 1983009808
    %v671 = vunpack.c.0.s8 %v670
    %v672 = vlaneseq
    %v673 = vshrl.u32 %v672, 7
    %v674 = vsub.s32 %v671, %v673
    %v675 = vrot.slane %v664, %v674
    %v677 = vunpack.c.l.s4 1983009808
    %v678 = vunpack.c.0.s8 %v677
    %v679 = vlaneseq
    %v680 = vshrl.u32 %v679, 7
    %v681 = vsub.s32 %v678, %v680
    %v682 = vrot.slane %v668, %v681
    %v683 = vcombine.high %v675, %v675
    %v684 = vcombine.high %v682, %v682
    %v686 = vunpack.c.l.s4 1983009808
    %v687 = vunpack.c.0.s8 %v686
    %v688 = vlaneseq
    %v689 = vshrl.u32 %v688, 7
    %v690 = vsub.s32 %v687, %v689
    %v691 = vrot.slane %v665, %v690
    %697 = vrot.lane.b32.xlu0 %v675, 126
    %v698 = vpop.permute.xlu0 %697
    %699 = vrot.lane.b32.xlu0 %v683, 126
    %v700 = vpop.permute.xlu0 %699
    %701 = vrot.lane.b32.xlu0 %v682, 126
    %v702 = vpop.permute.xlu0 %701
    %703 = vrot.lane.b32.xlu0 %v684, 126
    %v704 = vpop.permute.xlu0 %703
    %705 = vrot.lane.b32.xlu0 %v691, 126
    %v706 = vpop.permute.xlu0 %705
    %v707 = vsel %vm220, %v704, %v706
    %v708 = vsel %vm220, %v702, %v704
    %v709 = vsel %vm220, %v700, %v702
    %v710 = vsel %vm220, %v698, %v700
    %v711 = vsel %vm220, %v706, %v698
    %v717 = vcombine.low %v710, %v709
    %v718 = vcombine.low %v708, %v707
    %v720 = vunpack.c.l.s4 1983009808
    %v721 = vunpack.c.0.s8 %v720
    %v722 = vlaneseq
    %v723 = vshrl.u32 %v722, 7
    %v724 = vsub.s32 %v721, %v723
    %v725 = vrot.slane %v717, %v724
    %v727 = vunpack.c.l.s4 1983009808
    %v728 = vunpack.c.0.s8 %v727
    %v729 = vlaneseq
    %v730 = vshrl.u32 %v729, 7
    %v731 = vsub.s32 %v728, %v730
    %v732 = vrot.slane %v718, %v731
    %v733 = vcombine.low %v725, %v732
    %v735 = vunpack.c.l.s4 1983009808
    %v736 = vunpack.c.0.s8 %v735
    %v737 = vlaneseq
    %v738 = vshrl.u32 %v737, 7
    %v739 = vsub.s32 %v736, %v738
    %v740 = vrot.slane %v711, %v739
    %v743 = vmax.f32 %v664, %v733
    %v744 = vmax.f32 %v665, %v740
    %v745 = vld [vmem:[%s1] sm:$0xf]
    %s746 = sld [smem:[#allocation4]]
    %s747 = sld [smem:[#allocation11]]
    %v748 = vstv %s747
    %v749 = vmul.f32 %v748, %v745
    %v750 = vstv %s746
    %v751 = vadd.f32 %v750, %v749
    %s752 = sld [smem:[#allocation11 + $0x1]]
    %v755 = vunpack.c.l.s4 1983009808
    %v756 = vunpack.c.0.s8 %v755
    %v757 = vlaneseq
    %v758 = vshrl.u32 %v757, 7
    %v759 = vsub.s32 %v756, %v758
    %v760 = vrot.slane %v745, %v759
    %v761 = vcombine.high %v760, %v760
    %764 = vrot.lane.b32.xlu0 %v760, 127
    %v765 = vpop.permute.xlu0 %764
    %766 = vrot.lane.b32.xlu0 %v761, 127
    %v767 = vpop.permute.xlu0 %766
    %v768 = vsel %vm164, %v765, %v767
    %v769 = vsel %vm164, %v767, %v765
    %v770 = vstv %s752
    %v771 = vmul.f32 %v770, %v768
    %v772 = vmul.f32 %v770, %v769
    %v775 = vcombine.low %v771, %v772
    %v777 = vunpack.c.l.s4 1983009808
    %v778 = vunpack.c.0.s8 %v777
    %v779 = vlaneseq
    %v780 = vshrl.u32 %v779, 7
    %v781 = vsub.s32 %v778, %v780
    %v782 = vrot.slane %v775, %v781
    %v784 = vadd.f32 %v751, %v782
    %s785 = sld [smem:[#allocation11 + $0x2]]
    %786 = vrot.lane.b32.xlu0 %v760, 126
    %v787 = vpop.permute.xlu0 %786
    %788 = vrot.lane.b32.xlu0 %v761, 126
    %v789 = vpop.permute.xlu0 %788
    %v790 = vsel %vm220, %v787, %v789
    %v791 = vsel %vm220, %v789, %v787
    %v792 = vstv %s785
    %v793 = vmul.f32 %v792, %v790
    %v794 = vmul.f32 %v792, %v791
    %v797 = vcombine.low %v793, %v794
    %v799 = vunpack.c.l.s4 1983009808
    %v800 = vunpack.c.0.s8 %v799
    %v801 = vlaneseq
    %v802 = vshrl.u32 %v801, 7
    %v803 = vsub.s32 %v800, %v802
    %v804 = vrot.slane %v797, %v803
    %v806 = vadd.f32 %v784, %v804
    %v807 = vmax.f32 %v806, 0.0
    %v810 = vunpack.c.l.s4 1983009808
    %v811 = vunpack.c.0.s8 %v810
    %v812 = vlaneseq
    %v813 = vshrl.u32 %v812, 7
    %v814 = vsub.s32 %v811, %v813
    %v815 = vrot.slane %v807, %v814
    %v816 = vcombine.high %v815, %v815
    %819 = vrot.lane.b32.xlu0 %v815, 127
    %v820 = vpop.permute.xlu0 %819
    %821 = vrot.lane.b32.xlu0 %v816, 127
    %v822 = vpop.permute.xlu0 %821
    %v823 = vsel %vm164, %v820, %v822
    %v824 = vsel %vm164, %v822, %v820
    %v827 = vcombine.low %v823, %v824
    %v829 = vunpack.c.l.s4 1983009808
    %v830 = vunpack.c.0.s8 %v829
    %v831 = vlaneseq
    %v832 = vshrl.u32 %v831, 7
    %v833 = vsub.s32 %v830, %v832
    %v834 = vrot.slane %v827, %v833
    %v836 = vmax.f32 %v807, %v834
    %s837 = sld [smem:[#allocation5]]
    %s838 = sld [smem:[#allocation12]]
    %v839 = vstv %s838
    %v840 = vmul.f32 %v839, %v836
    %v841 = vstv %s837
    %v842 = vadd.f32 %v841, %v840
    %s843 = sld [smem:[#allocation12 + $0x1]]
    %v846 = vunpack.c.l.s4 1983009808
    %v847 = vunpack.c.0.s8 %v846
    %v848 = vlaneseq
    %v849 = vshrl.u32 %v848, 7
    %v850 = vsub.s32 %v847, %v849
    %v851 = vrot.slane %v836, %v850
    %v852 = vcombine.high %v851, %v851
    %855 = vrot.lane.b32.xlu0 %v851, 126
    %v856 = vpop.permute.xlu0 %855
    %857 = vrot.lane.b32.xlu0 %v852, 126
    %v858 = vpop.permute.xlu0 %857
    %v859 = vsel %vm220, %v856, %v858
    %v860 = vsel %vm220, %v858, %v856
    %v861 = vstv %s843
    %v862 = vmul.f32 %v861, %v859
    %v863 = vmul.f32 %v861, %v860
    %v866 = vcombine.low %v862, %v863
    %v868 = vunpack.c.l.s4 1983009808
    %v869 = vunpack.c.0.s8 %v868
    %v870 = vlaneseq
    %v871 = vshrl.u32 %v870, 7
    %v872 = vsub.s32 %v869, %v871
    %v873 = vrot.slane %v866, %v872
    %v875 = vadd.f32 %v842, %v873
    %s876 = sld [smem:[#allocation12 + $0x2]]
    %877 = vrot.lane.b32.xlu0 %v851, 124
    %v878 = vpop.permute.xlu0 %877
    %879 = vrot.lane.b32.xlu0 %v852, 124
    %v880 = vpop.permute.xlu0 %879
    %v881 = vsel %vm451, %v878, %v880
    %v882 = vsel %vm451, %v880, %v878
    %v883 = vstv %s876
    %v884 = vmul.f32 %v883, %v881
    %v885 = vmul.f32 %v883, %v882
    %v888 = vcombine.low %v884, %v885
    %v890 = vunpack.c.l.s4 1983009808
    %v891 = vunpack.c.0.s8 %v890
    %v892 = vlaneseq
    %v893 = vshrl.u32 %v892, 7
    %v894 = vsub.s32 %v891, %v893
    %v895 = vrot.slane %v888, %v894
    %v897 = vadd.f32 %v875, %v895
    %s898 = sld [smem:[#allocation12 + $0x3]]
    %899 = vrot.lane.b32.xlu0 %v851, 122
    %v900 = vpop.permute.xlu0 %899
    %901 = vrot.lane.b32.xlu0 %v852, 122
    %v902 = vpop.permute.xlu0 %901
    %v903 = vsel %vm507, %v900, %v902
    %v904 = vsel %vm507, %v902, %v900
    %v905 = vstv %s898
    %v906 = vmul.f32 %v905, %v903
    %v907 = vmul.f32 %v905, %v904
    %v910 = vcombine.low %v906, %v907
    %v912 = vunpack.c.l.s4 1983009808
    %v913 = vunpack.c.0.s8 %v912
    %v914 = vlaneseq
    %v915 = vshrl.u32 %v914, 7
    %v916 = vsub.s32 %v913, %v915
    %v917 = vrot.slane %v910, %v916
    %v919 = vadd.f32 %v897, %v917
    %v920 = vmax.f32 %v919, 0.0
    %v923 = vunpack.c.l.s4 1983009808
    %v924 = vunpack.c.0.s8 %v923
    %v925 = vlaneseq
    %v926 = vshrl.u32 %v925, 7
    %v927 = vsub.s32 %v924, %v926
    %v928 = vrot.slane %v920, %v927
    %v929 = vcombine.high %v928, %v928
    %932 = vrot.lane.b32.xlu0 %v928, 126
    %v933 = vpop.permute.xlu0 %932
    %934 = vrot.lane.b32.xlu0 %v929, 126
    %v935 = vpop.permute.xlu0 %934
    %v936 = vsel %vm220, %v933, %v935
    %v937 = vsel %vm220, %v935, %v933
    %v940 = vcombine.low %v936, %v937
    %v942 = vunpack.c.l.s4 1983009808
    %v943 = vunpack.c.0.s8 %v942
    %v944 = vlaneseq
    %v945 = vshrl.u32 %v944, 7
    %v946 = vsub.s32 %v943, %v945
    %v947 = vrot.slane %v940, %v946
    %v949 = vmax.f32 %v920, %v947
    %v950 = vld [vmem:[%s10] sm:$0xff]
    %v951 = vld [vmem:[%s10 + $0x8] sm:$0xff]
    %v952 = vld [vmem:[%s10 + $0x10] sm:$0xff]
    %v953 = vld [vmem:[%s10 + $0x18] sm:$0xff]
    %v954 = vld [vmem:[%s10 + $0x20] sm:$0xff]
    %v955 = vld [vmem:[%s10 + $0x28] sm:$0xff]
    %v956 = vld [vmem:[%s10 + $0x30] sm:$0xff]
    %v957 = vld [vmem:[%s10 + $0x38] sm:$0xff]
    %v958 = vld [vmem:[%s10 + $0x40] sm:$0xff]
    %v959 = vld [vmem:[%s10 + $0x48] sm:$0xff]
    %v960 = vld [vmem:[%s10 + $0x50] sm:$0xff]
    %v961 = vld [vmem:[%s10 + $0x58] sm:$0xff]
    %v962 = vld [vmem:[%s10 + $0x60] sm:$0xff]
    %v963 = vld [vmem:[%s10 + $0x68] sm:$0xff]
    %v964 = vld [vmem:[%s10 + $0x70] sm:$0xff]
    %v965 = vld [vmem:[%s10 + $0x78] sm:$0xff]
    %v966 = vld [vmem:[%s10 + $0x80] sm:$0xff]
    %v967 = vld [vmem:[%s10 + $0x88] sm:$0xff]
    %v968 = vld [vmem:[%s10 + $0x90] sm:$0xff]
    %v969 = vld [vmem:[%s10 + $0x98] sm:$0xff]
    %v970 = vld [vmem:[%s10 + $0xa0] sm:$0xff]
    %v971 = vld [vmem:[%s10 + $0xa8] sm:$0xff]
    %v972 = vld [vmem:[%s10 + $0xb0] sm:$0xff]
    %v973 = vld [vmem:[%s10 + $0xb8] sm:$0xff]
    %v974 = vld [vmem:[%s10 + $0xc0] sm:$0xff]
    %v975 = vld [vmem:[%s10 + $0xc8] sm:$0xff]
    %v976 = vld [vmem:[%s10 + $0xd0] sm:$0xff]
    %v977 = vld [vmem:[%s10 + $0xd8] sm:$0xff]
    %v978 = vld [vmem:[%s10 + $0xe0] sm:$0xff]
    %v979 = vld [vmem:[%s10 + $0xe8] sm:$0xff]
    %v980 = vld [vmem:[%s10 + $0xf0] sm:$0xff]
    %v981 = vld [vmem:[%s10 + $0xf8] sm:$0xff]
    %v982 = vld [vmem:[%s10 + $0x100] sm:$0xff]
    %v983 = vld [vmem:[%s10 + $0x108] sm:$0xff]
    %v984 = vld [vmem:[%s10 + $0x110] sm:$0xff]
    %v985 = vld [vmem:[%s10 + $0x118] sm:$0xff]
    %v986 = vld [vmem:[%s10 + $0x120] sm:$0xff]
    %v987 = vld [vmem:[%s10 + $0x128] sm:$0xff]
    %v988 = vld [vmem:[%s10 + $0x130] sm:$0xff]
    %v989 = vld [vmem:[%s10 + $0x138] sm:$0xff]
    %v990 = vld [vmem:[%s10 + $0x140] sm:$0xff]
    %v991 = vld [vmem:[%s10 + $0x148] sm:$0xff]
    %v992 = vld [vmem:[%s10 + $0x150] sm:$0xff]
    %v993 = vld [vmem:[%s10 + $0x158] sm:$0xff]
    %v994 = vld [vmem:[%s10 + $0x160] sm:$0xff]
    %v995 = vld [vmem:[%s10 + $0x168] sm:$0xff]
    %v996 = vld [vmem:[%s10 + $0x170] sm:$0xff]
    %v997 = vld [vmem:[%s10 + $0x178] sm:$0xff]
    %v998 = vld [vmem:[%s10 + $0x180] sm:$0xff]
    %v999 = vld [vmem:[%s10 + $0x188] sm:$0xff]
    %v1000 = vld [vmem:[%s10 + $0x190] sm:$0xff]
    %v1001 = vld [vmem:[%s10 + $0x198] sm:$0xff]
    %v1002 = vld [vmem:[%s10 + $0x1a0] sm:$0xff]
    %v1003 = vld [vmem:[%s10 + $0x1a8] sm:$0xff]
    %v1004 = vld [vmem:[%s10 + $0x1b0] sm:$0xff]
    %v1005 = vld [vmem:[%s10 + $0x1b8] sm:$0xff]
    %v1006 = vld [vmem:[%s10 + $0x1c0] sm:$0xff]
    %v1007 = vld [vmem:[%s10 + $0x1c8] sm:$0xff]
    %v1008 = vld [vmem:[%s10 + $0x1d0] sm:$0xff]
    %v1009 = vld [vmem:[%s10 + $0x1d8] sm:$0xff]
    %v1010 = vld [vmem:[%s10 + $0x1e0] sm:$0xff]
    %v1011 = vld [vmem:[%s10 + $0x1e8] sm:$0xff]
    %v1012 = vld [vmem:[%s10 + $0x1f0] sm:$0xff]
    %v1013 = vld [vmem:[%s10 + $0x1f8] sm:$0xff]
    %v1014 = vld [vmem:[%s10 + $0x200] sm:$0xff]
    %v1015 = vld [vmem:[%s10 + $0x208] sm:$0xff]
    %v1016 = vld [vmem:[%s10 + $0x210] sm:$0xff]
    %v1017 = vld [vmem:[%s10 + $0x218] sm:$0xff]
    %v1018 = vld [vmem:[%s10 + $0x220] sm:$0xff]
    %v1019 = vld [vmem:[%s10 + $0x228] sm:$0xff]
    %v1020 = vld [vmem:[%s10 + $0x230] sm:$0xff]
    %v1021 = vld [vmem:[%s10 + $0x238] sm:$0xff]
    %v1022 = vld [vmem:[%s10 + $0x240] sm:$0xff]
    %v1023 = vld [vmem:[%s10 + $0x248] sm:$0xff]
    %v1024 = vld [vmem:[%s10 + $0x250] sm:$0xff]
    %v1025 = vld [vmem:[%s10 + $0x258] sm:$0xff]
    %v1026 = vld [vmem:[%s10 + $0x260] sm:$0xff]
    %v1027 = vld [vmem:[%s10 + $0x268] sm:$0xff]
    %v1028 = vld [vmem:[%s10 + $0x270] sm:$0xff]
    %v1029 = vld [vmem:[%s10 + $0x278] sm:$0xff]
    %v1030 = vld [vmem:[%s11] sm:$0xff]
    %v1031 = vld [vmem:[%s11 + $0x8] sm:$0xff]
    %v1032 = vld [vmem:[%s11 + $0x10] sm:$0xff]
    %v1033 = vld [vmem:[%s11 + $0x18] sm:$0xff]
    %v1034 = vld [vmem:[%s11 + $0x20] sm:$0xff]
    %v1035 = vld [vmem:[%s11 + $0x28] sm:$0xff]
    %v1036 = vld [vmem:[%s11 + $0x30] sm:$0xff]
    %v1037 = vld [vmem:[%s11 + $0x38] sm:$0xff]
    %v1038 = vld [vmem:[%s11 + $0x40] sm:$0xff]
    %v1039 = vld [vmem:[%s11 + $0x48] sm:$0xff]
    %v1040 = vld [vmem:[%s11 + $0x50] sm:$0xff]
    %v1041 = vld [vmem:[%s11 + $0x58] sm:$0xff]
    %v1042 = vld [vmem:[%s11 + $0x60] sm:$0xff]
    %v1043 = vld [vmem:[%s11 + $0x68] sm:$0xff]
    %v1044 = vld [vmem:[%s11 + $0x70] sm:$0xff]
    %v1045 = vld [vmem:[%s11 + $0x78] sm:$0xff]
    %v1046 = vld [vmem:[%s11 + $0x80] sm:$0xff]
    %v1047 = vld [vmem:[%s11 + $0x88] sm:$0xff]
    %v1048 = vld [vmem:[%s11 + $0x90] sm:$0xff]
    %v1049 = vld [vmem:[%s11 + $0x98] sm:$0xff]
    %v1050 = vld [vmem:[%s11 + $0xa0] sm:$0xff]
    %v1051 = vld [vmem:[%s11 + $0xa8] sm:$0xff]
    %v1052 = vld [vmem:[%s11 + $0xb0] sm:$0xff]
    %v1053 = vld [vmem:[%s11 + $0xb8] sm:$0xff]
    %v1054 = vld [vmem:[%s11 + $0xc0] sm:$0xff]
    %v1055 = vld [vmem:[%s11 + $0xc8] sm:$0xff]
    %v1056 = vld [vmem:[%s11 + $0xd0] sm:$0xff]
    %v1057 = vld [vmem:[%s11 + $0xd8] sm:$0xff]
    %v1058 = vld [vmem:[%s11 + $0xe0] sm:$0xff]
    %v1059 = vld [vmem:[%s11 + $0xe8] sm:$0xff]
    %v1060 = vld [vmem:[%s11 + $0xf0] sm:$0xff]
    %v1061 = vld [vmem:[%s11 + $0xf8] sm:$0xff]
    %v1064 = vunpack.c.l.s4 1983009808
    %v1065 = vunpack.c.0.s8 %v1064
    %v1066 = vlaneseq
    %v1067 = vshrl.u32 %v1066, 7
    %v1068 = vsub.s32 %v1065, %v1067
    %v1069 = vrot.slane %v949, %v1068
    %v1070 = vcombine.high %v1069, %v1069
    %1073 = vmatprep.subr.mxu0 0.0
    %1074 = vmatpush1.msra.mxu0 %v1030
    %1075 = vmatprep.subr.mxu0 0.0
    %1076 = vmatpush1.msra.mxu0 %v1031
    %1077 = vmatprep.subr.mxu0 0.0
    %1078 = vmatpush1.msra.mxu0 %v1032
    %1079 = vmatprep.subr.mxu0 0.0
    %1080 = vmatpush1.msra.mxu0 %v1033
    %1081 = vmatprep.subr.mxu0 0.0
    %1082 = vmatpush1.msra.mxu0 %v1034
    %1083 = vmatprep.subr.mxu0 0.0
    %1084 = vmatpush1.msra.mxu0 %v1035
    %1085 = vmatprep.subr.mxu0 0.0
    %1086 = vmatpush1.msra.mxu0 %v1036
    %1087 = vmatprep.subr.mxu0 0.0
    %1088 = vmatpush1.msra.mxu0 %v1037
    %1089 = vmatprep.subr.mxu0 0.0
    %1090 = vmatpush1.msra.mxu0 %v1038
    %1091 = vmatprep.subr.mxu0 0.0
    %1092 = vmatpush1.msra.mxu0 %v1039
    %1093 = vmatprep.subr.mxu0 0.0
    %1094 = vmatpush1.msra.mxu0 %v1040
    %1095 = vmatprep.subr.mxu0 0.0
    %1096 = vmatpush1.msra.mxu0 %v1041
    %1097 = vmatprep.subr.mxu0 0.0
    %1098 = vmatpush1.msra.mxu0 %v1042
    %1099 = vmatprep.subr.mxu0 0.0
    %1100 = vmatpush1.msra.mxu0 %v1043
    %1101 = vmatprep.subr.mxu0 0.0
    %1102 = vmatpush1.msra.mxu0 %v1044
    %1103 = vmatprep.subr.mxu0 0.0
    %1104 = vmatpush1.msra.mxu0 %v1045
    %1105 = vmatprep.subr.mxu0 0.0
    %1106 = vmatpush1.msra.mxu0 %v1046
    %1107 = vmatprep.subr.mxu0 0.0
    %1108 = vmatpush1.msra.mxu0 %v1047
    %1109 = vmatprep.subr.mxu0 0.0
    %1110 = vmatpush1.msra.mxu0 %v1048
    %1111 = vmatprep.subr.mxu0 0.0
    %1112 = vmatpush1.msra.mxu0 %v1049
    %1113 = vmatprep.subr.mxu0 0.0
    %1114 = vmatpush1.msra.mxu0 %v1050
    %1115 = vmatprep.subr.mxu0 0.0
    %1116 = vmatpush1.msra.mxu0 %v1051
    %1117 = vmatprep.subr.mxu0 0.0
    %1118 = vmatpush1.msra.mxu0 %v1052
    %1119 = vmatprep.subr.mxu0 0.0
    %1120 = vmatpush1.msra.mxu0 %v1053
    %1121 = vmatprep.subr.mxu0 0.0
    %1122 = vmatpush1.msra.mxu0 %v1054
    %1123 = vmatprep.subr.mxu0 0.0
    %1124 = vmatpush1.msra.mxu0 %v1055
    %1125 = vmatprep.subr.mxu0 0.0
    %1126 = vmatpush1.msra.mxu0 %v1056
    %1127 = vmatprep.subr.mxu0 0.0
    %1128 = vmatpush1.msra.mxu0 %v1057
    %1129 = vmatprep.subr.mxu0 0.0
    %1130 = vmatpush1.msra.mxu0 %v1058
    %1131 = vmatprep.subr.mxu0 0.0
    %1132 = vmatpush1.msra.mxu0 %v1059
    %1133 = vmatprep.subr.mxu0 0.0
    %1134 = vmatpush1.msra.mxu0 %v1060
    %1135 = vmatprep.subr.mxu0 0.0
    %1136 = vmatpush1.msra.mxu0 %v1061
    %1137 = vmatprep.mubr.f32.mxu0 %v1070
    %1138 = vmatmul.mubr.f32.gmra.mrb[0].mxu0 %v1069
    %v1139 = vpop.f32.mrb[0].mxu0
    %v1140 = vadd.f32 0.0, %v1139
    %v1141 = vpop.f32.mrb[0].mxu0
    %1142 = vdwg.mxu0
    %v1145 = vcombine.high %v743, %v743
    %v1147 = vunpack.c.l.s4 1983009808
    %v1148 = vunpack.c.0.s8 %v1147
    %v1149 = vlaneseq
    %v1150 = vshrl.u32 %v1149, 7
    %v1151 = vsub.s32 %v1148, %v1150
    %v1152 = vrot.slane %v743, %v1151
    %v1154 = vunpack.c.l.s4 1983009808
    %v1155 = vunpack.c.0.s8 %v1154
    %v1156 = vlaneseq
    %v1157 = vshrl.u32 %v1156, 7
    %v1158 = vsub.s32 %v1155, %v1157
    %v1159 = vrot.slane %v1145, %v1158
    %v1160 = vcombine.high %v1152, %v1152
    %v1161 = vcombine.high %v1159, %v1159
    %v1163 = vunpack.c.l.s4 1983009808
    %v1164 = vunpack.c.0.s8 %v1163
    %v1165 = vlaneseq
    %v1166 = vshrl.u32 %v1165, 7
    %v1167 = vsub.s32 %v1164, %v1166
    %v1168 = vrot.slane %v744, %v1167
    %1174 = vmatprep.subr.mxu0 0.0
    %1175 = vmatpush1.msra.mxu0 %v950
    %1176 = vmatprep.subr.mxu0 0.0
    %1177 = vmatpush1.msra.mxu0 %v951
    %1178 = vmatprep.subr.mxu0 0.0
    %1179 = vmatpush1.msra.mxu0 %v952
    %1180 = vmatprep.subr.mxu0 0.0
    %1181 = vmatpush1.msra.mxu0 %v953
    %1182 = vmatprep.subr.mxu0 0.0
    %1183 = vmatpush1.msra.mxu0 %v954
    %1184 = vmatprep.subr.mxu0 0.0
    %1185 = vmatpush1.msra.mxu0 %v955
    %1186 = vmatprep.subr.mxu0 0.0
    %1187 = vmatpush1.msra.mxu0 %v956
    %1188 = vmatprep.subr.mxu0 0.0
    %1189 = vmatpush1.msra.mxu0 %v957
    %1190 = vmatprep.subr.mxu0 0.0
    %1191 = vmatpush1.msra.mxu0 %v958
    %1192 = vmatprep.subr.mxu0 0.0
    %1193 = vmatpush1.msra.mxu0 %v959
    %1194 = vmatprep.subr.mxu0 0.0
    %1195 = vmatpush1.msra.mxu0 %v960
    %1196 = vmatprep.subr.mxu0 0.0
    %1197 = vmatpush1.msra.mxu0 %v961
    %1198 = vmatprep.subr.mxu0 0.0
    %1199 = vmatpush1.msra.mxu0 %v962
    %1200 = vmatprep.subr.mxu0 0.0
    %1201 = vmatpush1.msra.mxu0 %v963
    %1202 = vmatprep.subr.mxu0 0.0
    %1203 = vmatpush1.msra.mxu0 %v964
    %1204 = vmatprep.subr.mxu0 0.0
    %1205 = vmatpush1.msra.mxu0 %v965
    %1206 = vmatprep.subr.mxu0 0.0
    %1207 = vmatpush1.msra.mxu0 %v966
    %1208 = vmatprep.subr.mxu0 0.0
    %1209 = vmatpush1.msra.mxu0 %v967
    %1210 = vmatprep.subr.mxu0 0.0
    %1211 = vmatpush1.msra.mxu0 %v968
    %1212 = vmatprep.subr.mxu0 0.0
    %1213 = vmatpush1.msra.mxu0 %v969
    %1214 = vmatprep.subr.mxu0 0.0
    %1215 = vmatpush1.msra.mxu0 %v970
    %1216 = vmatprep.subr.mxu0 0.0
    %1217 = vmatpush1.msra.mxu0 %v971
    %1218 = vmatprep.subr.mxu0 0.0
    %1219 = vmatpush1.msra.mxu0 %v972
    %1220 = vmatprep.subr.mxu0 0.0
    %1221 = vmatpush1.msra.mxu0 %v973
    %1222 = vmatprep.subr.mxu0 0.0
    %1223 = vmatpush1.msra.mxu0 %v974
    %1224 = vmatprep.subr.mxu0 0.0
    %1225 = vmatpush1.msra.mxu0 %v975
    %1226 = vmatprep.subr.mxu0 0.0
    %1227 = vmatpush1.msra.mxu0 %v976
    %1228 = vmatprep.subr.mxu0 0.0
    %1229 = vmatpush1.msra.mxu0 %v977
    %1230 = vmatprep.subr.mxu0 0.0
    %1231 = vmatpush1.msra.mxu0 %v978
    %1232 = vmatprep.subr.mxu0 0.0
    %1233 = vmatpush1.msra.mxu0 %v979
    %1234 = vmatprep.subr.mxu0 0.0
    %1235 = vmatpush1.msra.mxu0 %v980
    %1236 = vmatprep.subr.mxu0 0.0
    %1237 = vmatpush1.msra.mxu0 %v981
    %1238 = vmatprep.mubr.f32.mxu0 %v1160
    %1239 = vmatmul.mubr.f32.gmra.mrb[0].mxu0 %v1152
    %v1240 = vpop.f32.mrb[0].mxu0
    %v1241 = vadd.f32 %v1140, %v1240
    %v1242 = vpop.f32.mrb[0].mxu0
    %1243 = vdwg.mxu0
    %1244 = vmatprep.subr.mxu0 0.0
    %1245 = vmatpush1.msra.mxu0 %v982
    %1246 = vmatprep.subr.mxu0 0.0
    %1247 = vmatpush1.msra.mxu0 %v983
    %1248 = vmatprep.subr.mxu0 0.0
    %1249 = vmatpush1.msra.mxu0 %v984
    %1250 = vmatprep.subr.mxu0 0.0
    %1251 = vmatpush1.msra.mxu0 %v985
    %1252 = vmatprep.subr.mxu0 0.0
    %1253 = vmatpush1.msra.mxu0 %v986
    %1254 = vmatprep.subr.mxu0 0.0
    %1255 = vmatpush1.msra.mxu0 %v987
    %1256 = vmatprep.subr.mxu0 0.0
    %1257 = vmatpush1.msra.mxu0 %v988
    %1258 = vmatprep.subr.mxu0 0.0
    %1259 = vmatpush1.msra.mxu0 %v989
    %1260 = vmatprep.subr.mxu0 0.0
    %1261 = vmatpush1.msra.mxu0 %v990
    %1262 = vmatprep.subr.mxu0 0.0
    %1263 = vmatpush1.msra.mxu0 %v991
    %1264 = vmatprep.subr.mxu0 0.0
    %1265 = vmatpush1.msra.mxu0 %v992
    %1266 = vmatprep.subr.mxu0 0.0
    %1267 = vmatpush1.msra.mxu0 %v993
    %1268 = vmatprep.subr.mxu0 0.0
    %1269 = vmatpush1.msra.mxu0 %v994
    %1270 = vmatprep.subr.mxu0 0.0
    %1271 = vmatpush1.msra.mxu0 %v995
    %1272 = vmatprep.subr.mxu0 0.0
    %1273 = vmatpush1.msra.mxu0 %v996
    %1274 = vmatprep.subr.mxu0 0.0
    %1275 = vmatpush1.msra.mxu0 %v997
    %1276 = vmatprep.subr.mxu0 0.0
    %1277 = vmatpush1.msra.mxu0 %v998
    %1278 = vmatprep.subr.mxu0 0.0
    %1279 = vmatpush1.msra.mxu0 %v999
    %1280 = vmatprep.subr.mxu0 0.0
    %1281 = vmatpush1.msra.mxu0 %v1000
    %1282 = vmatprep.subr.mxu0 0.0
    %1283 = vmatpush1.msra.mxu0 %v1001
    %1284 = vmatprep.subr.mxu0 0.0
    %1285 = vmatpush1.msra.mxu0 %v1002
    %1286 = vmatprep.subr.mxu0 0.0
    %1287 = vmatpush1.msra.mxu0 %v1003
    %1288 = vmatprep.subr.mxu0 0.0
    %1289 = vmatpush1.msra.mxu0 %v1004
    %1290 = vmatprep.subr.mxu0 0.0
    %1291 = vmatpush1.msra.mxu0 %v1005
    %1292 = vmatprep.subr.mxu0 0.0
    %1293 = vmatpush1.msra.mxu0 %v1006
    %1294 = vmatprep.subr.mxu0 0.0
    %1295 = vmatpush1.msra.mxu0 %v1007
    %1296 = vmatprep.subr.mxu0 0.0
    %1297 = vmatpush1.msra.mxu0 %v1008
    %1298 = vmatprep.subr.mxu0 0.0
    %1299 = vmatpush1.msra.mxu0 %v1009
    %1300 = vmatprep.subr.mxu0 0.0
    %1301 = vmatpush1.msra.mxu0 %v1010
    %1302 = vmatprep.subr.mxu0 0.0
    %1303 = vmatpush1.msra.mxu0 %v1011
    %1304 = vmatprep.subr.mxu0 0.0
    %1305 = vmatpush1.msra.mxu0 %v1012
    %1306 = vmatprep.subr.mxu0 0.0
    %1307 = vmatpush1.msra.mxu0 %v1013
    %1308 = vmatprep.mubr.f32.mxu0 %v1161
    %1309 = vmatmul.mubr.f32.gmra.mrb[0].mxu0 %v1159
    %v1310 = vpop.f32.mrb[0].mxu0
    %v1311 = vadd.f32 %v1241, %v1310
    %v1312 = vpop.f32.mrb[0].mxu0
    %1313 = vdwg.mxu0
    %1314 = vmatprep.subr.mxu0 0.0
    %1315 = vmatpush1.msra.mxu0 %v1014
    %1316 = vmatprep.subr.mxu0 0.0
    %1317 = vmatpush1.msra.mxu0 %v1015
    %1318 = vmatprep.subr.mxu0 0.0
    %1319 = vmatpush1.msra.mxu0 %v1016
    %1320 = vmatprep.subr.mxu0 0.0
    %1321 = vmatpush1.msra.mxu0 %v1017
    %1322 = vmatprep.subr.mxu0 0.0
    %1323 = vmatpush1.msra.mxu0 %v1018
    %1324 = vmatprep.subr.mxu0 0.0
    %1325 = vmatpush1.msra.mxu0 %v1019
    %1326 = vmatprep.subr.mxu0 0.0
    %1327 = vmatpush1.msra.mxu0 %v1020
    %1328 = vmatprep.subr.mxu0 0.0
    %1329 = vmatpush1.msra.mxu0 %v1021
    %1330 = vmatprep.subr.mxu0 0.0
    %1331 = vmatpush1.msra.mxu0 %v1022
    %1332 = vmatprep.subr.mxu0 0.0
    %1333 = vmatpush1.msra.mxu0 %v1023
    %1334 = vmatprep.subr.mxu0 0.0
    %1335 = vmatpush1.msra.mxu0 %v1024
    %1336 = vmatprep.subr.mxu0 0.0
    %1337 = vmatpush1.msra.mxu0 %v1025
    %1338 = vmatprep.subr.mxu0 0.0
    %1339 = vmatpush1.msra.mxu0 %v1026
    %1340 = vmatprep.subr.mxu0 0.0
    %1341 = vmatpush1.msra.mxu0 %v1027
    %1342 = vmatprep.subr.mxu0 0.0
    %1343 = vmatpush1.msra.mxu0 %v1028
    %1344 = vmatprep.subr.mxu0 0.0
    %1345 = vmatpush1.msra.mxu0 %v1029
    %1346 = vmatprep.subr.mxu0 0.0
    %1347 = vmatpush1.msra.mxu0 0.0
    %1348 = vmatprep.subr.mxu0 0.0
    %1349 = vmatpush1.msra.mxu0 0.0
    %1350 = vmatprep.subr.mxu0 0.0
    %1351 = vmatpush1.msra.mxu0 0.0
    %1352 = vmatprep.subr.mxu0 0.0
    %1353 = vmatpush1.msra.mxu0 0.0
    %1354 = vmatprep.subr.mxu0 0.0
    %1355 = vmatpush1.msra.mxu0 0.0
    %1356 = vmatprep.subr.mxu0 0.0
    %1357 = vmatpush1.msra.mxu0 0.0
    %1358 = vmatprep.subr.mxu0 0.0
    %1359 = vmatpush1.msra.mxu0 0.0
    %1360 = vmatprep.subr.mxu0 0.0
    %1361 = vmatpush1.msra.mxu0 0.0
    %1362 = vmatprep.subr.mxu0 0.0
    %1363 = vmatpush1.msra.mxu0 0.0
    %1364 = vmatprep.subr.mxu0 0.0
    %1365 = vmatpush1.msra.mxu0 0.0
    %1366 = vmatprep.subr.mxu0 0.0
    %1367 = vmatpush1.msra.mxu0 0.0
    %1368 = vmatprep.subr.mxu0 0.0
    %1369 = vmatpush1.msra.mxu0 0.0
    %1370 = vmatprep.subr.mxu0 0.0
    %1371 = vmatpush1.msra.mxu0 0.0
    %1372 = vmatprep.subr.mxu0 0.0
    %1373 = vmatpush1.msra.mxu0 0.0
    %1374 = vmatprep.subr.mxu0 0.0
    %1375 = vmatpush1.msra.mxu0 0.0
    %1376 = vmatprep.subr.mxu0 0.0
    %1377 = vmatpush1.msra.mxu0 0.0
    %1378 = vmatprep.mubr.f32.mxu0 0.0
    %1379 = vmatmul.mubr.f32.gmra.mrb[0].mxu0 %v1168
    %v1380 = vpop.f32.mrb[0].mxu0
    %v1381 = vadd.f32 %v1311, %v1380
    %v1382 = vpop.f32.mrb[0].mxu0
    %1383 = vdwg.mxu0
    %v1384 = vld [vmem:[%s12] sm:$0x1]
    %v1386 = vlaneseq
    %v1387 = vshrl.u32 %v1386, 7
    %v1388 = vsub.s32 0, %v1387
    %v1389 = vrot.slane %v1384, %v1388
    %v1391 = vadd.f32 %v1381, %v1389
    %v1392 = vmax.f32 %v1391, 0.0
    %v1393 = vld [vmem:[%s13] sm:$0xff]
    %v1394 = vld [vmem:[%s13 + $0x8] sm:$0xff]
    %v1395 = vld [vmem:[%s13 + $0x10] sm:$0xff]
    %v1396 = vld [vmem:[%s13 + $0x18] sm:$0xff]
    %v1397 = vld [vmem:[%s13 + $0x20] sm:$0xff]
    %v1398 = vld [vmem:[%s13 + $0x28] sm:$0xff]
    %v1399 = vld [vmem:[%s13 + $0x30] sm:$0xff]
    %v1400 = vld [vmem:[%s13 + $0x38] sm:$0xff]
    %v1401 = vld [vmem:[%s13 + $0x40] sm:$0xff]
    %v1402 = vld [vmem:[%s13 + $0x48] sm:$0xff]
    %v1403 = vld [vmem:[%s13 + $0x50] sm:$0xff]
    %v1404 = vld [vmem:[%s13 + $0x58] sm:$0x3]
    %v1405 = vld [vmem:[%s14] sm:$0x1]
    %v1407 = vlaneseq
    %v1408 = vshrl.u32 %v1407, 7
    %v1409 = vsub.s32 0, %v1408
    %v1410 = vrot.slane %v1405, %v1409
    %vm1412 = vcmask 736256
    %v1414 = vsel %vm1412, %v1392, 0
    %vm1416 = vcmask 1041408
    %v1418 = vsel %vm1416, %v1404, 0
    %1420 = vmatprep.subr.mxu0 0.0
    %1421 = vmatpush1.msra.mxu0 %v1393
    %1422 = vmatprep.subr.mxu0 0.0
    %1423 = vmatpush1.msra.mxu0 %v1394
    %1424 = vmatprep.subr.mxu0 0.0
    %1425 = vmatpush1.msra.mxu0 %v1395
    %1426 = vmatprep.subr.mxu0 0.0
    %1427 = vmatpush1.msra.mxu0 %v1396
    %1428 = vmatprep.subr.mxu0 0.0
    %1429 = vmatpush1.msra.mxu0 %v1397
    %1430 = vmatprep.subr.mxu0 0.0
    %1431 = vmatpush1.msra.mxu0 %v1398
    %1432 = vmatprep.subr.mxu0 0.0
    %1433 = vmatpush1.msra.mxu0 %v1399
    %1434 = vmatprep.subr.mxu0 0.0
    %1435 = vmatpush1.msra.mxu0 %v1400
    %1436 = vmatprep.subr.mxu0 0.0
    %1437 = vmatpush1.msra.mxu0 %v1401
    %1438 = vmatprep.subr.mxu0 0.0
    %1439 = vmatpush1.msra.mxu0 %v1402
    %1440 = vmatprep.subr.mxu0 0.0
    %1441 = vmatpush1.msra.mxu0 %v1403
    %1442 = vmatprep.subr.mxu0 0.0
    %1443 = vmatpush1.msra.mxu0 %v1418
    %1444 = vmatprep.subr.mxu0 0.0
    %1445 = vmatpush1.msra.mxu0 0.0
    %1446 = vmatprep.subr.mxu0 0.0
    %1447 = vmatpush1.msra.mxu0 0.0
    %1448 = vmatprep.subr.mxu0 0.0
    %1449 = vmatpush1.msra.mxu0 0.0
    %1450 = vmatprep.subr.mxu0 0.0
    %1451 = vmatpush1.msra.mxu0 0.0
    %1452 = vmatprep.subr.mxu0 0.0
    %1453 = vmatpush1.msra.mxu0 0.0
    %1454 = vmatprep.subr.mxu0 0.0
    %1455 = vmatpush1.msra.mxu0 0.0
    %1456 = vmatprep.subr.mxu0 0.0
    %1457 = vmatpush1.msra.mxu0 0.0
    %1458 = vmatprep.subr.mxu0 0.0
    %1459 = vmatpush1.msra.mxu0 0.0
    %1460 = vmatprep.subr.mxu0 0.0
    %1461 = vmatpush1.msra.mxu0 0.0
    %1462 = vmatprep.subr.mxu0 0.0
    %1463 = vmatpush1.msra.mxu0 0.0
    %1464 = vmatprep.subr.mxu0 0.0
    %1465 = vmatpush1.msra.mxu0 0.0
    %1466 = vmatprep.subr.mxu0 0.0
    %1467 = vmatpush1.msra.mxu0 0.0
    %1468 = vmatprep.subr.mxu0 0.0
    %1469 = vmatpush1.msra.mxu0 0.0
    %1470 = vmatprep.subr.mxu0 0.0
    %1471 = vmatpush1.msra.mxu0 0.0
    %1472 = vmatprep.subr.mxu0 0.0
    %1473 = vmatpush1.msra.mxu0 0.0
    %1474 = vmatprep.subr.mxu0 0.0
    %1475 = vmatpush1.msra.mxu0 0.0
    %1476 = vmatprep.subr.mxu0 0.0
    %1477 = vmatpush1.msra.mxu0 0.0
    %1478 = vmatprep.subr.mxu0 0.0
    %1479 = vmatpush1.msra.mxu0 0.0
    %1480 = vmatprep.subr.mxu0 0.0
    %1481 = vmatpush1.msra.mxu0 0.0
    %1482 = vmatprep.subr.mxu0 0.0
    %1483 = vmatpush1.msra.mxu0 0.0
    %1484 = vmatprep.mubr.f32.mxu0 0.0
    %1485 = vmatmul.mubr.f32.gmra.mrb[0].mxu0 %v1414
    %v1486 = vpop.f32.mrb[0].mxu0
    %v1487 = vadd.f32 %v1410, %v1486
    %v1488 = vpop.f32.mrb[0].mxu0
    %1489 = vdwg.mxu0
    %v1490 = vmax.f32 %v1487, 0.0
    %v1491 = vld [vmem:[%s15] sm:$0xff]
    %v1492 = vld [vmem:[%s15 + $0x8] sm:$0x3]
    %v1493 = vld [vmem:[#allocation6] sm:$0x1]
    %v1495 = vlaneseq
    %v1496 = vshrl.u32 %v1495, 7
    %v1497 = vsub.s32 0, %v1496
    %v1498 = vrot.slane %v1493, %v1497
    %vm1500 = vcmask 80896
    %v1502 = vsel %vm1500, %v1490, 0
    %v1505 = vsel %vm1416, %v1492, 0
    %1507 = vmatprep.subr.mxu0 0.0
    %1508 = vmatpush1.msra.mxu0 %v1491
    %1509 = vmatprep.subr.mxu0 0.0
    %1510 = vmatpush1.msra.mxu0 %v1505
    %1511 = vmatprep.subr.mxu0 0.0
    %1512 = vmatpush1.msra.mxu0 0.0
    %1513 = vmatprep.subr.mxu0 0.0
    %1514 = vmatpush1.msra.mxu0 0.0
    %1515 = vmatprep.subr.mxu0 0.0
    %1516 = vmatpush1.msra.mxu0 0.0
    %1517 = vmatprep.subr.mxu0 0.0
    %1518 = vmatpush1.msra.mxu0 0.0
    %1519 = vmatprep.subr.mxu0 0.0
    %1520 = vmatpush1.msra.mxu0 0.0
    %1521 = vmatprep.subr.mxu0 0.0
    %1522 = vmatpush1.msra.mxu0 0.0
    %1523 = vmatprep.subr.mxu0 0.0
    %1524 = vmatpush1.msra.mxu0 0.0
    %1525 = vmatprep.subr.mxu0 0.0
    %1526 = vmatpush1.msra.mxu0 0.0
    %1527 = vmatprep.subr.mxu0 0.0
    %1528 = vmatpush1.msra.mxu0 0.0
    %1529 = vmatprep.subr.mxu0 0.0
    %1530 = vmatpush1.msra.mxu0 0.0
    %1531 = vmatprep.subr.mxu0 0.0
    %1532 = vmatpush1.msra.mxu0 0.0
    %1533 = vmatprep.subr.mxu0 0.0
    %1534 = vmatpush1.msra.mxu0 0.0
    %1535 = vmatprep.subr.mxu0 0.0
    %1536 = vmatpush1.msra.mxu0 0.0
    %1537 = vmatprep.subr.mxu0 0.0
    %1538 = vmatpush1.msra.mxu0 0.0
    %1539 = vmatprep.subr.mxu0 0.0
    %1540 = vmatpush1.msra.mxu0 0.0
    %1541 = vmatprep.subr.mxu0 0.0
    %1542 = vmatpush1.msra.mxu0 0.0
    %1543 = vmatprep.subr.mxu0 0.0
    %1544 = vmatpush1.msra.mxu0 0.0
    %1545 = vmatprep.subr.mxu0 0.0
    %1546 = vmatpush1.msra.mxu0 0.0
    %1547 = vmatprep.subr.mxu0 0.0
    %1548 = vmatpush1.msra.mxu0 0.0
    %1549 = vmatprep.subr.mxu0 0.0
    %1550 = vmatpush1.msra.mxu0 0.0
    %1551 = vmatprep.subr.mxu0 0.0
    %1552 = vmatpush1.msra.mxu0 0.0
    %1553 = vmatprep.subr.mxu0 0.0
    %1554 = vmatpush1.msra.mxu0 0.0
    %1555 = vmatprep.subr.mxu0 0.0
    %1556 = vmatpush1.msra.mxu0 0.0
    %1557 = vmatprep.subr.mxu0 0.0
    %1558 = vmatpush1.msra.mxu0 0.0
    %1559 = vmatprep.subr.mxu0 0.0
    %1560 = vmatpush1.msra.mxu0 0.0
    %1561 = vmatprep.subr.mxu0 0.0
    %1562 = vmatpush1.msra.mxu0 0.0
    %1563 = vmatprep.subr.mxu0 0.0
    %1564 = vmatpush1.msra.mxu0 0.0
    %1565 = vmatprep.subr.mxu0 0.0
    %1566 = vmatpush1.msra.mxu0 0.0
    %1567 = vmatprep.subr.mxu0 0.0
    %1568 = vmatpush1.msra.mxu0 0.0
    %1569 = vmatprep.subr.mxu0 0.0
    %1570 = vmatpush1.msra.mxu0 0.0
    %1571 = vmatprep.mubr.f32.mxu0 0.0
    %1572 = vmatmul.mubr.f32.gmra.mrb[0].mxu0 %v1502
    %v1573 = vpop.f32.mrb[0].mxu0
    %v1574 = vadd.f32 %v1498, %v1573
    %v1575 = vpop.f32.mrb[0].mxu0
    %1576 = vdwg.mxu0
    %v1577 = vsub.f32 0.0, %v1574
    %v1578 = vmul.f32 %v1577, 1.442695
    %v1579 = vpow.pop %v1578
    %v1580 = vadd.f32 %v1579, 1.0
    %v1581 = vrcp.pop %v1580
    %v1582 = vmul.f32 1.0, %v1581
    %vm1583 = vcmask 1024
    %1584 = vst.msk [vmem:[%s17] sm:$0x3] %vm1583, %v1582
    // Predicated region
    $region86: #{binding_cf_forward.1} parent=1 // pred_check
      _
    $region87: #{binding_cf_forward.1} parent=1 // pred_check_branch
      %1586 = sbr.rel (0) target = $region89
    $region88: #{binding_cf_forward.1} parent=1 // pred_region
      _
    $region89: #{binding_cf_forward.1} parent=1 // pred_fallthru
      _
    // Predicated region
    $region90: #{binding_cf_forward.1} parent=1 // pred_check
      _
    $region91: #{binding_cf_forward.1} parent=1 // pred_check_branch
      %1588 = sbr.rel (0) target = $region93
    $region92: #{binding_cf_forward.1} parent=1 // pred_region
      _
    $region93: #{binding_cf_forward.1} parent=1 // pred_fallthru
      _
    %1589 = vsyncpa [#allocation8], 1
    %1590 = vsyncpa [#allocation10], 1
    %1591 = vsyncpa [#allocation13], 1

</llo_original>
